<compile_context>
chip_gen: v5e
topology: v5e:2x2
jax: 0.10.0
libtpu: 0.0.40
codegen_flags: <defaults>
</compile_context>

<pallas_src>
import jax
import jax.numpy as jnp
from jax.experimental import pallas as pl
from jax.experimental.pallas import tpu as pltpu
import numpy as np


# ---------------------------------------------------------------------------
# Pallas kernel: full forward pass (LSTM recurrence + attention + output proj)
# ---------------------------------------------------------------------------
def lstm_atten_kernel(
    x_ref,        # (T*B, D)   bf16  time-major flattened input (row r = t*B + b)
    wih0_ref,     # (D, 4H)    bf16  layer-0 input weights (pre-transposed)
    whh0_ref,     # (H, 4H)    bf16  layer-0 recurrent weights
    b0_ref,       # (1, 4H)    f32   layer-0 combined bias (b_ih + b_hh)
    w1_ref,       # (2H, 4H)   bf16  layer-1 fused [Wih1; Whh1]
    b1_ref,       # (1, 4H)    f32   layer-1 combined bias
    wW_ref,       # (H, H)     bf16  attention weight_W
    battn_ref,    # (1, H)     f32   attention bias (PyTorch (H,1) bias, used per-feature)
    wproj_ref,    # (H, 1)     f32   attention projection weight_proj
    wout_ref,     # (H, O)     bf16  hidden2out weight (pre-transposed)
    bout_ref,     # (1, O)     f32   hidden2out bias
    sel_ref,      # (B, T*B)   f32   one-hot batch selector: sel[b, r] = (r % B == b)
    out_ref,      # (B, O)     f32   output
    xp_ref,       # scratch: (T*B, 4H) f32  hoisted layer-0 input projections
    lstm_ref,     # scratch: (T*B, H)  f32  layer-1 hidden states
):
    TB, _ = x_ref.shape
    B = sel_ref.shape[0]
    T = TB // B
    H = whh0_ref.shape[0]
    f32 = jnp.float32
    bf16 = jnp.bfloat16

    # ---- hoisted layer-0 input projection: one MXU-friendly matmul, bias folded in.
    xp_ref[...] = (
        jnp.dot(x_ref[...], wih0_ref[...], preferred_element_type=f32) + b0_ref[...]
    )

    whh0 = whh0_ref[...]
    w1 = w1_ref[...]
    b1 = b1_ref[...]

    def gates_to_hc(gates, c):
        # One whole-vreg sigmoid (covers i, f, o; g lanes unused) + one tanh on the
        # g chunk + one tanh(c): 3 EUP pushes per cell instead of 5.
        sig = jax.nn.sigmoid(gates)                # (B, 4H)
        i_g = sig[:, 0 * H:1 * H]
        f_g = sig[:, 1 * H:2 * H]
        o_g = sig[:, 3 * H:4 * H]
        g_g = jnp.tanh(gates[:, 2 * H:3 * H])
        c_new = f_g * c + i_g * g_g
        h_new = o_g * jnp.tanh(c_new)
        return h_new, c_new

    h0 = jnp.zeros((B, H), f32)
    c0 = jnp.zeros((B, H), f32)
    h1 = jnp.zeros((B, H), f32)
    c1 = jnp.zeros((B, H), f32)

    # Statically unrolled recurrence (T is small & static -> all slices are static).
    # Per step: one (B,H)@(H,4H) matmul for layer 0, one fused (B,2H)@(2H,4H) for layer 1.
    # TODO(synk): nn.LSTM dropout=0.2 is training-only (between layers); eval has none.
    for t in range(T):
        r0, r1 = t * B, (t + 1) * B
        g0 = xp_ref[r0:r1, :] + jnp.dot(
            h0.astype(bf16), whh0, preferred_element_type=f32
        )
        h0, c0 = gates_to_hc(g0, c0)

        xh = jnp.concatenate([h0, h1], axis=1).astype(bf16)        # (B, 2H)
        g1 = jnp.dot(xh, w1, preferred_element_type=f32) + b1
        h1, c1 = gates_to_hc(g1, c1)

        lstm_ref[r0:r1, :] = h1

    out_flat = lstm_ref[...]                                        # (T*B, H) f32

    # squish = tanh(out @ weight_W + bias_row)        (batch_matmul_bias, per-feature bias)
    squish = jnp.tanh(
        jnp.dot(out_flat.astype(bf16), wW_ref[...], preferred_element_type=f32)
        + battn_ref[...]
    )                                                               # (T*B, H)

    # attn scores = squish @ weight_proj
    scores = jnp.dot(squish, wproj_ref[...], preferred_element_type=f32)  # (T*B, 1)

    # Softmax over the time axis per batch column, fused into MXU matmuls:
    # a single shared max keeps exp() stable, the per-batch sums / weighted sums are
    # done with the one-hot selector matrix (MXU) instead of strided sublane reductions.
    m = jnp.max(scores, axis=0, keepdims=True)                      # (1, 1)
    e = jnp.exp(scores - m)                                         # (T*B, 1)
    sel = sel_ref[...]                                              # (B, T*B)
    numer = jnp.dot(sel, e * out_flat, preferred_element_type=f32)  # (B, H)
    denom = jnp.dot(sel, e, preferred_element_type=f32)             # (B, 1)
    attn_vec = numer * pl.reciprocal(denom, approx=True)            # (B, H)

    # hidden2out linear
    out_ref[...] = (
        jnp.dot(attn_vec.astype(bf16), wout_ref[...], preferred_element_type=f32)
        + bout_ref[...]
    )


# ---------------------------------------------------------------------------
# Wrapper
# ---------------------------------------------------------------------------
def lstm_atten_forward(x, params):
    B, C, T, D = x.shape
    assert C == 1, "module's reshape assumes a single channel"
    H = params["whh0"].shape[0]
    O = params["wout"].shape[1]
    bf16 = jnp.bfloat16

    # time-major, flattened: row r = t*B + b
    x_seq = jnp.transpose(x.reshape(B, T, D), (1, 0, 2)).astype(jnp.float32)
    x_flat = x_seq.reshape(T * B, D).astype(bf16)

    # fused layer-1 weights and one-hot batch selector, built once outside the kernel
    w1cat = jnp.concatenate([params["wih1"], params["whh1"]], axis=0).astype(bf16)
    sel = (
        jnp.arange(T * B, dtype=jnp.int32)[None, :] % B
        == jnp.arange(B, dtype=jnp.int32)[:, None]
    ).astype(jnp.float32)                                            # (B, T*B)

    args = (
        x_flat,
        params["wih0"].astype(bf16), params["whh0"].astype(bf16), params["b0"],
        w1cat, params["b1"],
        params["wW"].astype(bf16), params["battn"], params["wproj"],
        params["wout"].astype(bf16), params["bout"],
        sel,
    )

    vmem = pltpu.MemorySpace.VMEM
    out = pl.pallas_call(
        lstm_atten_kernel,
        out_shape=jax.ShapeDtypeStruct((B, O), jnp.float32),
        in_specs=[pl.BlockSpec(memory_space=vmem)] * len(args),
        out_specs=pl.BlockSpec(memory_space=vmem),
        scratch_shapes=[
            pltpu.VMEM((T * B, 4 * H), jnp.float32),   # hoisted layer-0 projections
            pltpu.VMEM((T * B, H), jnp.float32),       # layer-1 hidden states (2D, flat)
        ],
    )(*args)
    return out, out


# ---------------------------------------------------------------------------
# Pure-JAX reference (mirrors the PyTorch forward, eval mode, f32)
# ---------------------------------------------------------------------------
def reference_forward(x, p):
    B, C, T, D = x.shape
    xs = jnp.transpose(x.reshape(B, T, D), (1, 0, 2)).astype(jnp.float32)
    H = p["whh0"].shape[0]

    def cell(x_t, h, c, wih, whh, b):
        g = x_t @ wih + h @ whh + b
        i_g = jax.nn.sigmoid(g[:, :H])
        f_g = jax.nn.sigmoid(g[:, H:2 * H])
        g_g = jnp.tanh(g[:, 2 * H:3 * H])
        o_g = jax.nn.sigmoid(g[:, 3 * H:])
        c = f_g * c + i_g * g_g
        return o_g * jnp.tanh(c), c

    h0 = c0 = h1 = c1 = jnp.zeros((B, H), jnp.float32)
    outs = []
    for t in range(T):
        h0, c0 = cell(xs[t], h0, c0, p["wih0"], p["whh0"], p["b0"])
        h1, c1 = cell(h0, h1, c1, p["wih1"], p["whh1"], p["b1"])
        outs.append(h1)
    out_seq = jnp.stack(outs)                                   # (T, B, H)

    squish = jnp.tanh(out_seq @ p["wW"] + p["battn"])           # (T, B, H)
    attn = (squish @ p["wproj"])[..., 0]                        # (T, B)
    attn_norm = jax.nn.softmax(attn, axis=0)                    # softmax over time
    attn_vec = jnp.sum(attn_norm[..., None] * out_seq, axis=0)  # (B, H)
    out = attn_vec @ p["wout"] + p["bout"]
    return out, out


# ---------------------------------------------------------------------------
# Deterministic parameter construction
# ---------------------------------------------------------------------------
def make_params(key, input_dim, hidden_dim, output_dim):
    ks = jax.random.split(key, 12)
    H = hidden_dim
    s = 1.0 / np.sqrt(H)   # PyTorch default LSTM / Linear init range

    def u(k, shape, lim):
        return jax.random.uniform(k, shape, jnp.float32, -lim, lim)

    return {
        # LSTM layer 0 (weights stored pre-transposed: x @ W)
        "wih0": u(ks[0], (input_dim, 4 * H), s),
        "whh0": u(ks[1], (H, 4 * H), s),
        "b0":   u(ks[2], (1, 4 * H), s),          # combined b_ih + b_hh
        # LSTM layer 1
        "wih1": u(ks[3], (H, 4 * H), s),
        "whh1": u(ks[4], (H, 4 * H), s),
        "b1":   u(ks[5], (1, 4 * H), s),
        # attention parameters
        "wW":    u(ks[6], (H, H), 0.1),           # weight_W ~ U(-0.1, 0.1)
        "battn": u(ks[7], (1, H), 0.1),           # PyTorch (H,1) bias -> per-feature row
        "wproj": u(ks[8], (H, 1), 0.1),           # weight_proj ~ U(-0.1, 0.1)
        # hidden2out Linear
        "wout": u(ks[9], (H, output_dim), s),
        "bout": u(ks[10], (1, output_dim), s),
    }


if __name__ == "__main__":
    B, C, T, D = 2, 1, 8, 16      # small shapes; forward requires C == 1
    H, O = 32, 2

    key = jax.random.PRNGKey(0)
    kx, kp = jax.random.split(key)
    x = jax.random.normal(kx, (B, C, T, D), jnp.float32)
    params = make_params(kp, D, H, O)

    out, out2 = lstm_atten_forward(x, params)
    out = jax.block_until_ready(out)

    ref, _ = reference_forward(x, params)
    np.testing.assert_allclose(np.asarray(out), np.asarray(ref), rtol=5e-2, atol=2e-2)

    print("KERNEL_OK")
</pallas_src>

<mosaic_0001>
module attributes {stable_mosaic.version = 11 : i64} {
  func.func @lstm_atten_kernel(%arg0: memref<16x16xbf16, #tpu.memory_space<vmem>>, %arg1: memref<16x128xbf16, #tpu.memory_space<vmem>>, %arg2: memref<32x128xbf16, #tpu.memory_space<vmem>>, %arg3: memref<1x128xf32, #tpu.memory_space<vmem>>, %arg4: memref<64x128xbf16, #tpu.memory_space<vmem>>, %arg5: memref<1x128xf32, #tpu.memory_space<vmem>>, %arg6: memref<32x32xbf16, #tpu.memory_space<vmem>>, %arg7: memref<1x32xf32, #tpu.memory_space<vmem>>, %arg8: memref<32x1xf32, #tpu.memory_space<vmem>>, %arg9: memref<32x2xbf16, #tpu.memory_space<vmem>>, %arg10: memref<1x2xf32, #tpu.memory_space<vmem>>, %arg11: memref<2x16xf32, #tpu.memory_space<vmem>>, %arg12: memref<2x2xf32, #tpu.memory_space<vmem>>, %arg13: memref<16x128xf32, #tpu.memory_space<vmem>>, %arg14: memref<16x32xf32, #tpu.memory_space<vmem>>) attributes {dimension_semantics = [], scalar_prefetch = 0 : i64, scratch_operands = 2 : i64, tpu.core_type = #tpu.core_type<tc>} {
    %c0 = arith.constant 0 : index
    %c0_0 = arith.constant 0 : index
    %0 = vector.load %arg0[%c0, %c0_0] : memref<16x16xbf16, #tpu.memory_space<vmem>>, vector<16x16xbf16>
    %c0_1 = arith.constant 0 : index
    %c0_2 = arith.constant 0 : index
    %1 = vector.load %arg1[%c0_1, %c0_2] : memref<16x128xbf16, #tpu.memory_space<vmem>>, vector<16x128xbf16>
    %cst = arith.constant dense<0.000000e+00> : vector<16x128xf32>
    %2 = tpu.matmul %0, %1, %cst {dimension_numbers = #tpu.dot_dimension_numbers<[1], [0], [0], [1], [0, 0, 1, 1], [], []>} : vector<16x16xbf16>, vector<16x128xbf16>, vector<16x128xf32> -> vector<16x128xf32>
    %c0_3 = arith.constant 0 : index
    %c0_4 = arith.constant 0 : index
    %3 = vector.load %arg3[%c0_3, %c0_4] : memref<1x128xf32, #tpu.memory_space<vmem>>, vector<1x128xf32>
    %4 = vector.broadcast %3 : vector<1x128xf32> to vector<16x128xf32>
    %5 = arith.addf %2, %4 : vector<16x128xf32>
    %c0_5 = arith.constant 0 : index
    %c0_6 = arith.constant 0 : index
    %6 = vector.load %arg13[%c0_5, %c0_6] : memref<16x128xf32, #tpu.memory_space<vmem>>, vector<16x128xf32>
    tpu.vector_store %arg13[%c0_5, %c0_6], %5 {strides = array<i32>} : memref<16x128xf32, #tpu.memory_space<vmem>>, vector<16x128xf32>,
    %c0_7 = arith.constant 0 : index
    %c0_8 = arith.constant 0 : index
    %7 = vector.load %arg2[%c0_7, %c0_8] : memref<32x128xbf16, #tpu.memory_space<vmem>>, vector<32x128xbf16>
    %c0_9 = arith.constant 0 : index
    %c0_10 = arith.constant 0 : index
    %8 = vector.load %arg4[%c0_9, %c0_10] : memref<64x128xbf16, #tpu.memory_space<vmem>>, vector<64x128xbf16>
    %c0_11 = arith.constant 0 : index
    %c0_12 = arith.constant 0 : index
    %9 = vector.load %arg5[%c0_11, %c0_12] : memref<1x128xf32, #tpu.memory_space<vmem>>, vector<1x128xf32>
    %cst_13 = arith.constant 0.000000e+00 : f32
    %10 = vector.broadcast %cst_13 : f32 to vector<2x32xf32>
    %cst_14 = arith.constant 0.000000e+00 : f32
    %11 = vector.broadcast %cst_14 : f32 to vector<2x32xf32>
    %cst_15 = arith.constant 0.000000e+00 : f32
    %12 = vector.broadcast %cst_15 : f32 to vector<2x32xf32>
    %cst_16 = arith.constant 0.000000e+00 : f32
    %13 = vector.broadcast %cst_16 : f32 to vector<2x32xf32>
    %c0_17 = arith.constant 0 : index
    %c0_18 = arith.constant 0 : index
    %14 = vector.load %arg13[%c0_17, %c0_18] : memref<16x128xf32, #tpu.memory_space<vmem>>, vector<2x128xf32>
    %15 = arith.truncf %10 : vector<2x32xf32> to vector<2x32xbf16>
    %cst_19 = arith.constant dense<0.000000e+00> : vector<2x128xf32>
    %16 = tpu.matmul %15, %7, %cst_19 {dimension_numbers = #tpu.dot_dimension_numbers<[1], [0], [0], [1], [0, 0, 1, 1], [], []>} : vector<2x32xbf16>, vector<32x128xbf16>, vector<2x128xf32> -> vector<2x128xf32>
    %17 = arith.addf %14, %16 : vector<2x128xf32>
    %18 = arith.negf %17 : vector<2x128xf32>
    %19 = math.exp %18 : vector<2x128xf32>
    %cst_20 = arith.constant 1.000000e+00 : f32
    %20 = vector.broadcast %cst_20 : f32 to vector<2x128xf32>
    %21 = arith.addf %20, %19 : vector<2x128xf32>
    %22 = arith.divf %20, %21 : vector<2x128xf32>
    %23 = vector.extract_strided_slice %22 {offsets = [0, 0], sizes = [2, 32], strides = [1, 1]} : vector<2x128xf32> to vector<2x32xf32>
    %24 = vector.extract_strided_slice %22 {offsets = [0, 32], sizes = [2, 32], strides = [1, 1]} : vector<2x128xf32> to vector<2x32xf32>
    %25 = vector.extract_strided_slice %22 {offsets = [0, 96], sizes = [2, 32], strides = [1, 1]} : vector<2x128xf32> to vector<2x32xf32>
    %26 = vector.extract_strided_slice %17 {offsets = [0, 64], sizes = [2, 32], strides = [1, 1]} : vector<2x128xf32> to vector<2x32xf32>
    %27 = math.tanh %26 : vector<2x32xf32>
    %28 = arith.mulf %24, %11 : vector<2x32xf32>
    %29 = arith.mulf %23, %27 : vector<2x32xf32>
    %30 = arith.addf %28, %29 : vector<2x32xf32>
    %31 = math.tanh %30 : vector<2x32xf32>
    %32 = arith.mulf %25, %31 : vector<2x32xf32>
    %33 = tpu.concatenate %32, %12 in 1 : vector<2x32xf32>, vector<2x32xf32> -> vector<2x64xf32>
    %34 = arith.truncf %33 : vector<2x64xf32> to vector<2x64xbf16>
    %cst_21 = arith.constant dense<0.000000e+00> : vector<2x128xf32>
    %35 = tpu.matmul %34, %8, %cst_21 {dimension_numbers = #tpu.dot_dimension_numbers<[1], [0], [0], [1], [0, 0, 1, 1], [], []>} : vector<2x64xbf16>, vector<64x128xbf16>, vector<2x128xf32> -> vector<2x128xf32>
    %36 = vector.broadcast %9 : vector<1x128xf32> to vector<2x128xf32>
    %37 = arith.addf %35, %36 : vector<2x128xf32>
    %38 = arith.negf %37 : vector<2x128xf32>
    %39 = math.exp %38 : vector<2x128xf32>
    %cst_22 = arith.constant 1.000000e+00 : f32
    %40 = vector.broadcast %cst_22 : f32 to vector<2x128xf32>
    %41 = arith.addf %40, %39 : vector<2x128xf32>
    %42 = arith.divf %40, %41 : vector<2x128xf32>
    %43 = vector.extract_strided_slice %42 {offsets = [0, 0], sizes = [2, 32], strides = [1, 1]} : vector<2x128xf32> to vector<2x32xf32>
    %44 = vector.extract_strided_slice %42 {offsets = [0, 32], sizes = [2, 32], strides = [1, 1]} : vector<2x128xf32> to vector<2x32xf32>
    %45 = vector.extract_strided_slice %42 {offsets = [0, 96], sizes = [2, 32], strides = [1, 1]} : vector<2x128xf32> to vector<2x32xf32>
    %46 = vector.extract_strided_slice %37 {offsets = [0, 64], sizes = [2, 32], strides = [1, 1]} : vector<2x128xf32> to vector<2x32xf32>
    %47 = math.tanh %46 : vector<2x32xf32>
    %48 = arith.mulf %44, %13 : vector<2x32xf32>
    %49 = arith.mulf %43, %47 : vector<2x32xf32>
    %50 = arith.addf %48, %49 : vector<2x32xf32>
    %51 = math.tanh %50 : vector<2x32xf32>
    %52 = arith.mulf %45, %51 : vector<2x32xf32>
    %c0_23 = arith.constant 0 : index
    %c0_24 = arith.constant 0 : index
    %53 = vector.load %arg14[%c0_23, %c0_24] : memref<16x32xf32, #tpu.memory_space<vmem>>, vector<2x32xf32>
    tpu.vector_store %arg14[%c0_23, %c0_24], %52 {strides = array<i32>} : memref<16x32xf32, #tpu.memory_space<vmem>>, vector<2x32xf32>,
    %c2 = arith.constant 2 : index
    %c0_25 = arith.constant 0 : index
    %54 = vector.load %arg13[%c2, %c0_25] : memref<16x128xf32, #tpu.memory_space<vmem>>, vector<2x128xf32>
    %55 = arith.truncf %32 : vector<2x32xf32> to vector<2x32xbf16>
    %cst_26 = arith.constant dense<0.000000e+00> : vector<2x128xf32>
    %56 = tpu.matmul %55, %7, %cst_26 {dimension_numbers = #tpu.dot_dimension_numbers<[1], [0], [0], [1], [0, 0, 1, 1], [], []>} : vector<2x32xbf16>, vector<32x128xbf16>, vector<2x128xf32> -> vector<2x128xf32>
    %57 = arith.addf %54, %56 : vector<2x128xf32>
    %58 = arith.negf %57 : vector<2x128xf32>
    %59 = math.exp %58 : vector<2x128xf32>
    %cst_27 = arith.constant 1.000000e+00 : f32
    %60 = vector.broadcast %cst_27 : f32 to vector<2x128xf32>
    %61 = arith.addf %60, %59 : vector<2x128xf32>
    %62 = arith.divf %60, %61 : vector<2x128xf32>
    %63 = vector.extract_strided_slice %62 {offsets = [0, 0], sizes = [2, 32], strides = [1, 1]} : vector<2x128xf32> to vector<2x32xf32>
    %64 = vector.extract_strided_slice %62 {offsets = [0, 32], sizes = [2, 32], strides = [1, 1]} : vector<2x128xf32> to vector<2x32xf32>
    %65 = vector.extract_strided_slice %62 {offsets = [0, 96], sizes = [2, 32], strides = [1, 1]} : vector<2x128xf32> to vector<2x32xf32>
    %66 = vector.extract_strided_slice %57 {offsets = [0, 64], sizes = [2, 32], strides = [1, 1]} : vector<2x128xf32> to vector<2x32xf32>
    %67 = math.tanh %66 : vector<2x32xf32>
    %68 = arith.mulf %64, %30 : vector<2x32xf32>
    %69 = arith.mulf %63, %67 : vector<2x32xf32>
    %70 = arith.addf %68, %69 : vector<2x32xf32>
    %71 = math.tanh %70 : vector<2x32xf32>
    %72 = arith.mulf %65, %71 : vector<2x32xf32>
    %73 = tpu.concatenate %72, %52 in 1 : vector<2x32xf32>, vector<2x32xf32> -> vector<2x64xf32>
    %74 = arith.truncf %73 : vector<2x64xf32> to vector<2x64xbf16>
    %cst_28 = arith.constant dense<0.000000e+00> : vector<2x128xf32>
    %75 = tpu.matmul %74, %8, %cst_28 {dimension_numbers = #tpu.dot_dimension_numbers<[1], [0], [0], [1], [0, 0, 1, 1], [], []>} : vector<2x64xbf16>, vector<64x128xbf16>, vector<2x128xf32> -> vector<2x128xf32>
    %76 = vector.broadcast %9 : vector<1x128xf32> to vector<2x128xf32>
    %77 = arith.addf %75, %76 : vector<2x128xf32>
    %78 = arith.negf %77 : vector<2x128xf32>
    %79 = math.exp %78 : vector<2x128xf32>
    %cst_29 = arith.constant 1.000000e+00 : f32
    %80 = vector.broadcast %cst_29 : f32 to vector<2x128xf32>
    %81 = arith.addf %80, %79 : vector<2x128xf32>
    %82 = arith.divf %80, %81 : vector<2x128xf32>
    %83 = vector.extract_strided_slice %82 {offsets = [0, 0], sizes = [2, 32], strides = [1, 1]} : vector<2x128xf32> to vector<2x32xf32>
    %84 = vector.extract_strided_slice %82 {offsets = [0, 32], sizes = [2, 32], strides = [1, 1]} : vector<2x128xf32> to vector<2x32xf32>
    %85 = vector.extract_strided_slice %82 {offsets = [0, 96], sizes = [2, 32], strides = [1, 1]} : vector<2x128xf32> to vector<2x32xf32>
    %86 = vector.extract_strided_slice %77 {offsets = [0, 64], sizes = [2, 32], strides = [1, 1]} : vector<2x128xf32> to vector<2x32xf32>
    %87 = math.tanh %86 : vector<2x32xf32>
    %88 = arith.mulf %84, %50 : vector<2x32xf32>
    %89 = arith.mulf %83, %87 : vector<2x32xf32>
    %90 = arith.addf %88, %89 : vector<2x32xf32>
    %91 = math.tanh %90 : vector<2x32xf32>
    %92 = arith.mulf %85, %91 : vector<2x32xf32>
    %c2_30 = arith.constant 2 : index
    %c0_31 = arith.constant 0 : index
    %93 = vector.load %arg14[%c2_30, %c0_31] : memref<16x32xf32, #tpu.memory_space<vmem>>, vector<2x32xf32>
    tpu.vector_store %arg14[%c2_30, %c0_31], %92 {strides = array<i32>} : memref<16x32xf32, #tpu.memory_space<vmem>>, vector<2x32xf32>,
    %c4 = arith.constant 4 : index
    %c0_32 = arith.constant 0 : index
    %94 = vector.load %arg13[%c4, %c0_32] : memref<16x128xf32, #tpu.memory_space<vmem>>, vector<2x128xf32>
    %95 = arith.truncf %72 : vector<2x32xf32> to vector<2x32xbf16>
    %cst_33 = arith.constant dense<0.000000e+00> : vector<2x128xf32>
    %96 = tpu.matmul %95, %7, %cst_33 {dimension_numbers = #tpu.dot_dimension_numbers<[1], [0], [0], [1], [0, 0, 1, 1], [], []>} : vector<2x32xbf16>, vector<32x128xbf16>, vector<2x128xf32> -> vector<2x128xf32>
    %97 = arith.addf %94, %96 : vector<2x128xf32>
    %98 = arith.negf %97 : vector<2x128xf32>
    %99 = math.exp %98 : vector<2x128xf32>
    %cst_34 = arith.constant 1.000000e+00 : f32
    %100 = vector.broadcast %cst_34 : f32 to vector<2x128xf32>
    %101 = arith.addf %100, %99 : vector<2x128xf32>
    %102 = arith.divf %100, %101 : vector<2x128xf32>
    %103 = vector.extract_strided_slice %102 {offsets = [0, 0], sizes = [2, 32], strides = [1, 1]} : vector<2x128xf32> to vector<2x32xf32>
    %104 = vector.extract_strided_slice %102 {offsets = [0, 32], sizes = [2, 32], strides = [1, 1]} : vector<2x128xf32> to vector<2x32xf32>
    %105 = vector.extract_strided_slice %102 {offsets = [0, 96], sizes = [2, 32], strides = [1, 1]} : vector<2x128xf32> to vector<2x32xf32>
    %106 = vector.extract_strided_slice %97 {offsets = [0, 64], sizes = [2, 32], strides = [1, 1]} : vector<2x128xf32> to vector<2x32xf32>
    %107 = math.tanh %106 : vector<2x32xf32>
    %108 = arith.mulf %104, %70 : vector<2x32xf32>
    %109 = arith.mulf %103, %107 : vector<2x32xf32>
    %110 = arith.addf %108, %109 : vector<2x32xf32>
    %111 = math.tanh %110 : vector<2x32xf32>
    %112 = arith.mulf %105, %111 : vector<2x32xf32>
    %113 = tpu.concatenate %112, %92 in 1 : vector<2x32xf32>, vector<2x32xf32> -> vector<2x64xf32>
    %114 = arith.truncf %113 : vector<2x64xf32> to vector<2x64xbf16>
    %cst_35 = arith.constant dense<0.000000e+00> : vector<2x128xf32>
    %115 = tpu.matmul %114, %8, %cst_35 {dimension_numbers = #tpu.dot_dimension_numbers<[1], [0], [0], [1], [0, 0, 1, 1], [], []>} : vector<2x64xbf16>, vector<64x128xbf16>, vector<2x128xf32> -> vector<2x128xf32>
    %116 = vector.broadcast %9 : vector<1x128xf32> to vector<2x128xf32>
    %117 = arith.addf %115, %116 : vector<2x128xf32>
    %118 = arith.negf %117 : vector<2x128xf32>
    %119 = math.exp %118 : vector<2x128xf32>
    %cst_36 = arith.constant 1.000000e+00 : f32
    %120 = vector.broadcast %cst_36 : f32 to vector<2x128xf32>
    %121 = arith.addf %120, %119 : vector<2x128xf32>
    %122 = arith.divf %120, %121 : vector<2x128xf32>
    %123 = vector.extract_strided_slice %122 {offsets = [0, 0], sizes = [2, 32], strides = [1, 1]} : vector<2x128xf32> to vector<2x32xf32>
    %124 = vector.extract_strided_slice %122 {offsets = [0, 32], sizes = [2, 32], strides = [1, 1]} : vector<2x128xf32> to vector<2x32xf32>
    %125 = vector.extract_strided_slice %122 {offsets = [0, 96], sizes = [2, 32], strides = [1, 1]} : vector<2x128xf32> to vector<2x32xf32>
    %126 = vector.extract_strided_slice %117 {offsets = [0, 64], sizes = [2, 32], strides = [1, 1]} : vector<2x128xf32> to vector<2x32xf32>
    %127 = math.tanh %126 : vector<2x32xf32>
    %128 = arith.mulf %124, %90 : vector<2x32xf32>
    %129 = arith.mulf %123, %127 : vector<2x32xf32>
    %130 = arith.addf %128, %129 : vector<2x32xf32>
    %131 = math.tanh %130 : vector<2x32xf32>
    %132 = arith.mulf %125, %131 : vector<2x32xf32>
    %c4_37 = arith.constant 4 : index
    %c0_38 = arith.constant 0 : index
    %133 = vector.load %arg14[%c4_37, %c0_38] : memref<16x32xf32, #tpu.memory_space<vmem>>, vector<2x32xf32>
    tpu.vector_store %arg14[%c4_37, %c0_38], %132 {strides = array<i32>} : memref<16x32xf32, #tpu.memory_space<vmem>>, vector<2x32xf32>,
    %c6 = arith.constant 6 : index
    %c0_39 = arith.constant 0 : index
    %134 = vector.load %arg13[%c6, %c0_39] : memref<16x128xf32, #tpu.memory_space<vmem>>, vector<2x128xf32>
    %135 = arith.truncf %112 : vector<2x32xf32> to vector<2x32xbf16>
    %cst_40 = arith.constant dense<0.000000e+00> : vector<2x128xf32>
    %136 = tpu.matmul %135, %7, %cst_40 {dimension_numbers = #tpu.dot_dimension_numbers<[1], [0], [0], [1], [0, 0, 1, 1], [], []>} : vector<2x32xbf16>, vector<32x128xbf16>, vector<2x128xf32> -> vector<2x128xf32>
    %137 = arith.addf %134, %136 : vector<2x128xf32>
    %138 = arith.negf %137 : vector<2x128xf32>
    %139 = math.exp %138 : vector<2x128xf32>
    %cst_41 = arith.constant 1.000000e+00 : f32
    %140 = vector.broadcast %cst_41 : f32 to vector<2x128xf32>
    %141 = arith.addf %140, %139 : vector<2x128xf32>
    %142 = arith.divf %140, %141 : vector<2x128xf32>
    %143 = vector.extract_strided_slice %142 {offsets = [0, 0], sizes = [2, 32], strides = [1, 1]} : vector<2x128xf32> to vector<2x32xf32>
    %144 = vector.extract_strided_slice %142 {offsets = [0, 32], sizes = [2, 32], strides = [1, 1]} : vector<2x128xf32> to vector<2x32xf32>
    %145 = vector.extract_strided_slice %142 {offsets = [0, 96], sizes = [2, 32], strides = [1, 1]} : vector<2x128xf32> to vector<2x32xf32>
    %146 = vector.extract_strided_slice %137 {offsets = [0, 64], sizes = [2, 32], strides = [1, 1]} : vector<2x128xf32> to vector<2x32xf32>
    %147 = math.tanh %146 : vector<2x32xf32>
    %148 = arith.mulf %144, %110 : vector<2x32xf32>
    %149 = arith.mulf %143, %147 : vector<2x32xf32>
    %150 = arith.addf %148, %149 : vector<2x32xf32>
    %151 = math.tanh %150 : vector<2x32xf32>
    %152 = arith.mulf %145, %151 : vector<2x32xf32>
    %153 = tpu.concatenate %152, %132 in 1 : vector<2x32xf32>, vector<2x32xf32> -> vector<2x64xf32>
    %154 = arith.truncf %153 : vector<2x64xf32> to vector<2x64xbf16>
    %cst_42 = arith.constant dense<0.000000e+00> : vector<2x128xf32>
    %155 = tpu.matmul %154, %8, %cst_42 {dimension_numbers = #tpu.dot_dimension_numbers<[1], [0], [0], [1], [0, 0, 1, 1], [], []>} : vector<2x64xbf16>, vector<64x128xbf16>, vector<2x128xf32> -> vector<2x128xf32>
    %156 = vector.broadcast %9 : vector<1x128xf32> to vector<2x128xf32>
    %157 = arith.addf %155, %156 : vector<2x128xf32>
    %158 = arith.negf %157 : vector<2x128xf32>
    %159 = math.exp %158 : vector<2x128xf32>
    %cst_43 = arith.constant 1.000000e+00 : f32
    %160 = vector.broadcast %cst_43 : f32 to vector<2x128xf32>
    %161 = arith.addf %160, %159 : vector<2x128xf32>
    %162 = arith.divf %160, %161 : vector<2x128xf32>
    %163 = vector.extract_strided_slice %162 {offsets = [0, 0], sizes = [2, 32], strides = [1, 1]} : vector<2x128xf32> to vector<2x32xf32>
    %164 = vector.extract_strided_slice %162 {offsets = [0, 32], sizes = [2, 32], strides = [1, 1]} : vector<2x128xf32> to vector<2x32xf32>
    %165 = vector.extract_strided_slice %162 {offsets = [0, 96], sizes = [2, 32], strides = [1, 1]} : vector<2x128xf32> to vector<2x32xf32>
    %166 = vector.extract_strided_slice %157 {offsets = [0, 64], sizes = [2, 32], strides = [1, 1]} : vector<2x128xf32> to vector<2x32xf32>
    %167 = math.tanh %166 : vector<2x32xf32>
    %168 = arith.mulf %164, %130 : vector<2x32xf32>
    %169 = arith.mulf %163, %167 : vector<2x32xf32>
    %170 = arith.addf %168, %169 : vector<2x32xf32>
    %171 = math.tanh %170 : vector<2x32xf32>
    %172 = arith.mulf %165, %171 : vector<2x32xf32>
    %c6_44 = arith.constant 6 : index
    %c0_45 = arith.constant 0 : index
    %173 = vector.load %arg14[%c6_44, %c0_45] : memref<16x32xf32, #tpu.memory_space<vmem>>, vector<2x32xf32>
    tpu.vector_store %arg14[%c6_44, %c0_45], %172 {strides = array<i32>} : memref<16x32xf32, #tpu.memory_space<vmem>>, vector<2x32xf32>,
    %c8 = arith.constant 8 : index
    %c0_46 = arith.constant 0 : index
    %174 = vector.load %arg13[%c8, %c0_46] : memref<16x128xf32, #tpu.memory_space<vmem>>, vector<2x128xf32>
    %175 = arith.truncf %152 : vector<2x32xf32> to vector<2x32xbf16>
    %cst_47 = arith.constant dense<0.000000e+00> : vector<2x128xf32>
    %176 = tpu.matmul %175, %7, %cst_47 {dimension_numbers = #tpu.dot_dimension_numbers<[1], [0], [0], [1], [0, 0, 1, 1], [], []>} : vector<2x32xbf16>, vector<32x128xbf16>, vector<2x128xf32> -> vector<2x128xf32>
    %177 = arith.addf %174, %176 : vector<2x128xf32>
    %178 = arith.negf %177 : vector<2x128xf32>
    %179 = math.exp %178 : vector<2x128xf32>
    %cst_48 = arith.constant 1.000000e+00 : f32
    %180 = vector.broadcast %cst_48 : f32 to vector<2x128xf32>
    %181 = arith.addf %180, %179 : vector<2x128xf32>
    %182 = arith.divf %180, %181 : vector<2x128xf32>
    %183 = vector.extract_strided_slice %182 {offsets = [0, 0], sizes = [2, 32], strides = [1, 1]} : vector<2x128xf32> to vector<2x32xf32>
    %184 = vector.extract_strided_slice %182 {offsets = [0, 32], sizes = [2, 32], strides = [1, 1]} : vector<2x128xf32> to vector<2x32xf32>
    %185 = vector.extract_strided_slice %182 {offsets = [0, 96], sizes = [2, 32], strides = [1, 1]} : vector<2x128xf32> to vector<2x32xf32>
    %186 = vector.extract_strided_slice %177 {offsets = [0, 64], sizes = [2, 32], strides = [1, 1]} : vector<2x128xf32> to vector<2x32xf32>
    %187 = math.tanh %186 : vector<2x32xf32>
    %188 = arith.mulf %184, %150 : vector<2x32xf32>
    %189 = arith.mulf %183, %187 : vector<2x32xf32>
    %190 = arith.addf %188, %189 : vector<2x32xf32>
    %191 = math.tanh %190 : vector<2x32xf32>
    %192 = arith.mulf %185, %191 : vector<2x32xf32>
    %193 = tpu.concatenate %192, %172 in 1 : vector<2x32xf32>, vector<2x32xf32> -> vector<2x64xf32>
    %194 = arith.truncf %193 : vector<2x64xf32> to vector<2x64xbf16>
    %cst_49 = arith.constant dense<0.000000e+00> : vector<2x128xf32>
    %195 = tpu.matmul %194, %8, %cst_49 {dimension_numbers = #tpu.dot_dimension_numbers<[1], [0], [0], [1], [0, 0, 1, 1], [], []>} : vector<2x64xbf16>, vector<64x128xbf16>, vector<2x128xf32> -> vector<2x128xf32>
    %196 = vector.broadcast %9 : vector<1x128xf32> to vector<2x128xf32>
    %197 = arith.addf %195, %196 : vector<2x128xf32>
    %198 = arith.negf %197 : vector<2x128xf32>
    %199 = math.exp %198 : vector<2x128xf32>
    %cst_50 = arith.constant 1.000000e+00 : f32
    %200 = vector.broadcast %cst_50 : f32 to vector<2x128xf32>
    %201 = arith.addf %200, %199 : vector<2x128xf32>
    %202 = arith.divf %200, %201 : vector<2x128xf32>
    %203 = vector.extract_strided_slice %202 {offsets = [0, 0], sizes = [2, 32], strides = [1, 1]} : vector<2x128xf32> to vector<2x32xf32>
    %204 = vector.extract_strided_slice %202 {offsets = [0, 32], sizes = [2, 32], strides = [1, 1]} : vector<2x128xf32> to vector<2x32xf32>
    %205 = vector.extract_strided_slice %202 {offsets = [0, 96], sizes = [2, 32], strides = [1, 1]} : vector<2x128xf32> to vector<2x32xf32>
    %206 = vector.extract_strided_slice %197 {offsets = [0, 64], sizes = [2, 32], strides = [1, 1]} : vector<2x128xf32> to vector<2x32xf32>
    %207 = math.tanh %206 : vector<2x32xf32>
    %208 = arith.mulf %204, %170 : vector<2x32xf32>
    %209 = arith.mulf %203, %207 : vector<2x32xf32>
    %210 = arith.addf %208, %209 : vector<2x32xf32>
    %211 = math.tanh %210 : vector<2x32xf32>
    %212 = arith.mulf %205, %211 : vector<2x32xf32>
    %c8_51 = arith.constant 8 : index
    %c0_52 = arith.constant 0 : index
    %213 = vector.load %arg14[%c8_51, %c0_52] : memref<16x32xf32, #tpu.memory_space<vmem>>, vector<2x32xf32>
    tpu.vector_store %arg14[%c8_51, %c0_52], %212 {strides = array<i32>} : memref<16x32xf32, #tpu.memory_space<vmem>>, vector<2x32xf32>,
    %c10 = arith.constant 10 : index
    %c0_53 = arith.constant 0 : index
    %214 = vector.load %arg13[%c10, %c0_53] : memref<16x128xf32, #tpu.memory_space<vmem>>, vector<2x128xf32>
    %215 = arith.truncf %192 : vector<2x32xf32> to vector<2x32xbf16>
    %cst_54 = arith.constant dense<0.000000e+00> : vector<2x128xf32>
    %216 = tpu.matmul %215, %7, %cst_54 {dimension_numbers = #tpu.dot_dimension_numbers<[1], [0], [0], [1], [0, 0, 1, 1], [], []>} : vector<2x32xbf16>, vector<32x128xbf16>, vector<2x128xf32> -> vector<2x128xf32>
    %217 = arith.addf %214, %216 : vector<2x128xf32>
    %218 = arith.negf %217 : vector<2x128xf32>
    %219 = math.exp %218 : vector<2x128xf32>
    %cst_55 = arith.constant 1.000000e+00 : f32
    %220 = vector.broadcast %cst_55 : f32 to vector<2x128xf32>
    %221 = arith.addf %220, %219 : vector<2x128xf32>
    %222 = arith.divf %220, %221 : vector<2x128xf32>
    %223 = vector.extract_strided_slice %222 {offsets = [0, 0], sizes = [2, 32], strides = [1, 1]} : vector<2x128xf32> to vector<2x32xf32>
    %224 = vector.extract_strided_slice %222 {offsets = [0, 32], sizes = [2, 32], strides = [1, 1]} : vector<2x128xf32> to vector<2x32xf32>
    %225 = vector.extract_strided_slice %222 {offsets = [0, 96], sizes = [2, 32], strides = [1, 1]} : vector<2x128xf32> to vector<2x32xf32>
    %226 = vector.extract_strided_slice %217 {offsets = [0, 64], sizes = [2, 32], strides = [1, 1]} : vector<2x128xf32> to vector<2x32xf32>
    %227 = math.tanh %226 : vector<2x32xf32>
    %228 = arith.mulf %224, %190 : vector<2x32xf32>
    %229 = arith.mulf %223, %227 : vector<2x32xf32>
    %230 = arith.addf %228, %229 : vector<2x32xf32>
    %231 = math.tanh %230 : vector<2x32xf32>
    %232 = arith.mulf %225, %231 : vector<2x32xf32>
    %233 = tpu.concatenate %232, %212 in 1 : vector<2x32xf32>, vector<2x32xf32> -> vector<2x64xf32>
    %234 = arith.truncf %233 : vector<2x64xf32> to vector<2x64xbf16>
    %cst_56 = arith.constant dense<0.000000e+00> : vector<2x128xf32>
    %235 = tpu.matmul %234, %8, %cst_56 {dimension_numbers = #tpu.dot_dimension_numbers<[1], [0], [0], [1], [0, 0, 1, 1], [], []>} : vector<2x64xbf16>, vector<64x128xbf16>, vector<2x128xf32> -> vector<2x128xf32>
    %236 = vector.broadcast %9 : vector<1x128xf32> to vector<2x128xf32>
    %237 = arith.addf %235, %236 : vector<2x128xf32>
    %238 = arith.negf %237 : vector<2x128xf32>
    %239 = math.exp %238 : vector<2x128xf32>
    %cst_57 = arith.constant 1.000000e+00 : f32
    %240 = vector.broadcast %cst_57 : f32 to vector<2x128xf32>
    %241 = arith.addf %240, %239 : vector<2x128xf32>
    %242 = arith.divf %240, %241 : vector<2x128xf32>
    %243 = vector.extract_strided_slice %242 {offsets = [0, 0], sizes = [2, 32], strides = [1, 1]} : vector<2x128xf32> to vector<2x32xf32>
    %244 = vector.extract_strided_slice %242 {offsets = [0, 32], sizes = [2, 32], strides = [1, 1]} : vector<2x128xf32> to vector<2x32xf32>
    %245 = vector.extract_strided_slice %242 {offsets = [0, 96], sizes = [2, 32], strides = [1, 1]} : vector<2x128xf32> to vector<2x32xf32>
    %246 = vector.extract_strided_slice %237 {offsets = [0, 64], sizes = [2, 32], strides = [1, 1]} : vector<2x128xf32> to vector<2x32xf32>
    %247 = math.tanh %246 : vector<2x32xf32>
    %248 = arith.mulf %244, %210 : vector<2x32xf32>
    %249 = arith.mulf %243, %247 : vector<2x32xf32>
    %250 = arith.addf %248, %249 : vector<2x32xf32>
    %251 = math.tanh %250 : vector<2x32xf32>
    %252 = arith.mulf %245, %251 : vector<2x32xf32>
    %c10_58 = arith.constant 10 : index
    %c0_59 = arith.constant 0 : index
    %253 = vector.load %arg14[%c10_58, %c0_59] : memref<16x32xf32, #tpu.memory_space<vmem>>, vector<2x32xf32>
    tpu.vector_store %arg14[%c10_58, %c0_59], %252 {strides = array<i32>} : memref<16x32xf32, #tpu.memory_space<vmem>>, vector<2x32xf32>,
    %c12 = arith.constant 12 : index
    %c0_60 = arith.constant 0 : index
    %254 = vector.load %arg13[%c12, %c0_60] : memref<16x128xf32, #tpu.memory_space<vmem>>, vector<2x128xf32>
    %255 = arith.truncf %232 : vector<2x32xf32> to vector<2x32xbf16>
    %cst_61 = arith.constant dense<0.000000e+00> : vector<2x128xf32>
    %256 = tpu.matmul %255, %7, %cst_61 {dimension_numbers = #tpu.dot_dimension_numbers<[1], [0], [0], [1], [0, 0, 1, 1], [], []>} : vector<2x32xbf16>, vector<32x128xbf16>, vector<2x128xf32> -> vector<2x128xf32>
    %257 = arith.addf %254, %256 : vector<2x128xf32>
    %258 = arith.negf %257 : vector<2x128xf32>
    %259 = math.exp %258 : vector<2x128xf32>
    %cst_62 = arith.constant 1.000000e+00 : f32
    %260 = vector.broadcast %cst_62 : f32 to vector<2x128xf32>
    %261 = arith.addf %260, %259 : vector<2x128xf32>
    %262 = arith.divf %260, %261 : vector<2x128xf32>
    %263 = vector.extract_strided_slice %262 {offsets = [0, 0], sizes = [2, 32], strides = [1, 1]} : vector<2x128xf32> to vector<2x32xf32>
    %264 = vector.extract_strided_slice %262 {offsets = [0, 32], sizes = [2, 32], strides = [1, 1]} : vector<2x128xf32> to vector<2x32xf32>
    %265 = vector.extract_strided_slice %262 {offsets = [0, 96], sizes = [2, 32], strides = [1, 1]} : vector<2x128xf32> to vector<2x32xf32>
    %266 = vector.extract_strided_slice %257 {offsets = [0, 64], sizes = [2, 32], strides = [1, 1]} : vector<2x128xf32> to vector<2x32xf32>
    %267 = math.tanh %266 : vector<2x32xf32>
    %268 = arith.mulf %264, %230 : vector<2x32xf32>
    %269 = arith.mulf %263, %267 : vector<2x32xf32>
    %270 = arith.addf %268, %269 : vector<2x32xf32>
    %271 = math.tanh %270 : vector<2x32xf32>
    %272 = arith.mulf %265, %271 : vector<2x32xf32>
    %273 = tpu.concatenate %272, %252 in 1 : vector<2x32xf32>, vector<2x32xf32> -> vector<2x64xf32>
    %274 = arith.truncf %273 : vector<2x64xf32> to vector<2x64xbf16>
    %cst_63 = arith.constant dense<0.000000e+00> : vector<2x128xf32>
    %275 = tpu.matmul %274, %8, %cst_63 {dimension_numbers = #tpu.dot_dimension_numbers<[1], [0], [0], [1], [0, 0, 1, 1], [], []>} : vector<2x64xbf16>, vector<64x128xbf16>, vector<2x128xf32> -> vector<2x128xf32>
    %276 = vector.broadcast %9 : vector<1x128xf32> to vector<2x128xf32>
    %277 = arith.addf %275, %276 : vector<2x128xf32>
    %278 = arith.negf %277 : vector<2x128xf32>
    %279 = math.exp %278 : vector<2x128xf32>
    %cst_64 = arith.constant 1.000000e+00 : f32
    %280 = vector.broadcast %cst_64 : f32 to vector<2x128xf32>
    %281 = arith.addf %280, %279 : vector<2x128xf32>
    %282 = arith.divf %280, %281 : vector<2x128xf32>
    %283 = vector.extract_strided_slice %282 {offsets = [0, 0], sizes = [2, 32], strides = [1, 1]} : vector<2x128xf32> to vector<2x32xf32>
    %284 = vector.extract_strided_slice %282 {offsets = [0, 32], sizes = [2, 32], strides = [1, 1]} : vector<2x128xf32> to vector<2x32xf32>
    %285 = vector.extract_strided_slice %282 {offsets = [0, 96], sizes = [2, 32], strides = [1, 1]} : vector<2x128xf32> to vector<2x32xf32>
    %286 = vector.extract_strided_slice %277 {offsets = [0, 64], sizes = [2, 32], strides = [1, 1]} : vector<2x128xf32> to vector<2x32xf32>
    %287 = math.tanh %286 : vector<2x32xf32>
    %288 = arith.mulf %284, %250 : vector<2x32xf32>
    %289 = arith.mulf %283, %287 : vector<2x32xf32>
    %290 = arith.addf %288, %289 : vector<2x32xf32>
    %291 = math.tanh %290 : vector<2x32xf32>
    %292 = arith.mulf %285, %291 : vector<2x32xf32>
    %c12_65 = arith.constant 12 : index
    %c0_66 = arith.constant 0 : index
    %293 = vector.load %arg14[%c12_65, %c0_66] : memref<16x32xf32, #tpu.memory_space<vmem>>, vector<2x32xf32>
    tpu.vector_store %arg14[%c12_65, %c0_66], %292 {strides = array<i32>} : memref<16x32xf32, #tpu.memory_space<vmem>>, vector<2x32xf32>,
    %c14 = arith.constant 14 : index
    %c0_67 = arith.constant 0 : index
    %294 = vector.load %arg13[%c14, %c0_67] : memref<16x128xf32, #tpu.memory_space<vmem>>, vector<2x128xf32>
    %295 = arith.truncf %272 : vector<2x32xf32> to vector<2x32xbf16>
    %cst_68 = arith.constant dense<0.000000e+00> : vector<2x128xf32>
    %296 = tpu.matmul %295, %7, %cst_68 {dimension_numbers = #tpu.dot_dimension_numbers<[1], [0], [0], [1], [0, 0, 1, 1], [], []>} : vector<2x32xbf16>, vector<32x128xbf16>, vector<2x128xf32> -> vector<2x128xf32>
    %297 = arith.addf %294, %296 : vector<2x128xf32>
    %298 = arith.negf %297 : vector<2x128xf32>
    %299 = math.exp %298 : vector<2x128xf32>
    %cst_69 = arith.constant 1.000000e+00 : f32
    %300 = vector.broadcast %cst_69 : f32 to vector<2x128xf32>
    %301 = arith.addf %300, %299 : vector<2x128xf32>
    %302 = arith.divf %300, %301 : vector<2x128xf32>
    %303 = vector.extract_strided_slice %302 {offsets = [0, 0], sizes = [2, 32], strides = [1, 1]} : vector<2x128xf32> to vector<2x32xf32>
    %304 = vector.extract_strided_slice %302 {offsets = [0, 32], sizes = [2, 32], strides = [1, 1]} : vector<2x128xf32> to vector<2x32xf32>
    %305 = vector.extract_strided_slice %302 {offsets = [0, 96], sizes = [2, 32], strides = [1, 1]} : vector<2x128xf32> to vector<2x32xf32>
    %306 = vector.extract_strided_slice %297 {offsets = [0, 64], sizes = [2, 32], strides = [1, 1]} : vector<2x128xf32> to vector<2x32xf32>
    %307 = math.tanh %306 : vector<2x32xf32>
    %308 = arith.mulf %304, %270 : vector<2x32xf32>
    %309 = arith.mulf %303, %307 : vector<2x32xf32>
    %310 = arith.addf %308, %309 : vector<2x32xf32>
    %311 = math.tanh %310 : vector<2x32xf32>
    %312 = arith.mulf %305, %311 : vector<2x32xf32>
    %313 = tpu.concatenate %312, %292 in 1 : vector<2x32xf32>, vector<2x32xf32> -> vector<2x64xf32>
    %314 = arith.truncf %313 : vector<2x64xf32> to vector<2x64xbf16>
    %cst_70 = arith.constant dense<0.000000e+00> : vector<2x128xf32>
    %315 = tpu.matmul %314, %8, %cst_70 {dimension_numbers = #tpu.dot_dimension_numbers<[1], [0], [0], [1], [0, 0, 1, 1], [], []>} : vector<2x64xbf16>, vector<64x128xbf16>, vector<2x128xf32> -> vector<2x128xf32>
    %316 = vector.broadcast %9 : vector<1x128xf32> to vector<2x128xf32>
    %317 = arith.addf %315, %316 : vector<2x128xf32>
    %318 = arith.negf %317 : vector<2x128xf32>
    %319 = math.exp %318 : vector<2x128xf32>
    %cst_71 = arith.constant 1.000000e+00 : f32
    %320 = vector.broadcast %cst_71 : f32 to vector<2x128xf32>
    %321 = arith.addf %320, %319 : vector<2x128xf32>
    %322 = arith.divf %320, %321 : vector<2x128xf32>
    %323 = vector.extract_strided_slice %322 {offsets = [0, 0], sizes = [2, 32], strides = [1, 1]} : vector<2x128xf32> to vector<2x32xf32>
    %324 = vector.extract_strided_slice %322 {offsets = [0, 32], sizes = [2, 32], strides = [1, 1]} : vector<2x128xf32> to vector<2x32xf32>
    %325 = vector.extract_strided_slice %322 {offsets = [0, 96], sizes = [2, 32], strides = [1, 1]} : vector<2x128xf32> to vector<2x32xf32>
    %326 = vector.extract_strided_slice %317 {offsets = [0, 64], sizes = [2, 32], strides = [1, 1]} : vector<2x128xf32> to vector<2x32xf32>
    %327 = math.tanh %326 : vector<2x32xf32>
    %328 = arith.mulf %324, %290 : vector<2x32xf32>
    %329 = arith.mulf %323, %327 : vector<2x32xf32>
    %330 = arith.addf %328, %329 : vector<2x32xf32>
    %331 = math.tanh %330 : vector<2x32xf32>
    %332 = arith.mulf %325, %331 : vector<2x32xf32>
    %c14_72 = arith.constant 14 : index
    %c0_73 = arith.constant 0 : index
    %333 = vector.load %arg14[%c14_72, %c0_73] : memref<16x32xf32, #tpu.memory_space<vmem>>, vector<2x32xf32>
    tpu.vector_store %arg14[%c14_72, %c0_73], %332 {strides = array<i32>} : memref<16x32xf32, #tpu.memory_space<vmem>>, vector<2x32xf32>,
    %c0_74 = arith.constant 0 : index
    %c0_75 = arith.constant 0 : index
    %334 = vector.load %arg14[%c0_74, %c0_75] : memref<16x32xf32, #tpu.memory_space<vmem>>, vector<16x32xf32>
    %335 = arith.truncf %334 : vector<16x32xf32> to vector<16x32xbf16>
    %c0_76 = arith.constant 0 : index
    %c0_77 = arith.constant 0 : index
    %336 = vector.load %arg6[%c0_76, %c0_77] : memref<32x32xbf16, #tpu.memory_space<vmem>>, vector<32x32xbf16>
    %cst_78 = arith.constant dense<0.000000e+00> : vector<16x32xf32>
    %337 = tpu.matmul %335, %336, %cst_78 {dimension_numbers = #tpu.dot_dimension_numbers<[1], [0], [0], [1], [0, 0, 1, 1], [], []>} : vector<16x32xbf16>, vector<32x32xbf16>, vector<16x32xf32> -> vector<16x32xf32>
    %c0_79 = arith.constant 0 : index
    %c0_80 = arith.constant 0 : index
    %338 = vector.load %arg7[%c0_79, %c0_80] : memref<1x32xf32, #tpu.memory_space<vmem>>, vector<1x32xf32>
    %339 = vector.broadcast %338 : vector<1x32xf32> to vector<16x32xf32>
    %340 = arith.addf %337, %339 : vector<16x32xf32>
    %341 = math.tanh %340 : vector<16x32xf32>
    %c0_81 = arith.constant 0 : index
    %c0_82 = arith.constant 0 : index
    %342 = vector.load %arg8[%c0_81, %c0_82] : memref<32x1xf32, #tpu.memory_space<vmem>>, vector<32x1xf32>
    %cst_83 = arith.constant dense<0.000000e+00> : vector<16x1xf32>
    %343 = tpu.matmul %341, %342, %cst_83 {dimension_numbers = #tpu.dot_dimension_numbers<[1], [0], [0], [1], [0, 0, 1, 1], [], []>} : vector<16x32xf32>, vector<32x1xf32>, vector<16x1xf32> -> vector<16x1xf32>
    %cst_84 = arith.constant dense<0xFF800000> : vector<1xf32>
    %344 = vector.multi_reduction <maximumf>, %343, %cst_84 [0] : vector<16x1xf32> to vector<1xf32>
    %345 = vector.shape_cast %344 : vector<1xf32> to vector<1x1xf32>
    %346 = vector.broadcast %345 : vector<1x1xf32> to vector<16x1xf32>
    %347 = arith.subf %343, %346 : vector<16x1xf32>
    %348 = math.exp %347 : vector<16x1xf32>
    %c0_85 = arith.constant 0 : index
    %c0_86 = arith.constant 0 : index
    %349 = vector.load %arg11[%c0_85, %c0_86] : memref<2x16xf32, #tpu.memory_space<vmem>>, vector<2x16xf32>
    %350 = vector.broadcast %348 : vector<16x1xf32> to vector<16x32xf32>
    %351 = arith.mulf %350, %334 : vector<16x32xf32>
    %cst_87 = arith.constant dense<0.000000e+00> : vector<2x32xf32>
    %352 = tpu.matmul %349, %351, %cst_87 {dimension_numbers = #tpu.dot_dimension_numbers<[1], [0], [0], [1], [0, 0, 1, 1], [], []>} : vector<2x16xf32>, vector<16x32xf32>, vector<2x32xf32> -> vector<2x32xf32>
    %cst_88 = arith.constant dense<0.000000e+00> : vector<2x1xf32>
    %353 = tpu.matmul %349, %348, %cst_88 {dimension_numbers = #tpu.dot_dimension_numbers<[1], [0], [0], [1], [0, 0, 1, 1], [], []>} : vector<2x16xf32>, vector<16x1xf32>, vector<2x1xf32> -> vector<2x1xf32>
    %354 = tpu.reciprocal %353 {approx = true} : vector<2x1xf32> -> vector<2x1xf32>
    %355 = vector.broadcast %354 : vector<2x1xf32> to vector<2x32xf32>
    %356 = arith.mulf %352, %355 : vector<2x32xf32>
    %357 = arith.truncf %356 : vector<2x32xf32> to vector<2x32xbf16>
    %c0_89 = arith.constant 0 : index
    %c0_90 = arith.constant 0 : index
    %358 = vector.load %arg9[%c0_89, %c0_90] : memref<32x2xbf16, #tpu.memory_space<vmem>>, vector<32x2xbf16>
    %cst_91 = arith.constant dense<0.000000e+00> : vector<2x2xf32>
    %359 = tpu.matmul %357, %358, %cst_91 {dimension_numbers = #tpu.dot_dimension_numbers<[1], [0], [0], [1], [0, 0, 1, 1], [], []>} : vector<2x32xbf16>, vector<32x2xbf16>, vector<2x2xf32> -> vector<2x2xf32>
    %c0_92 = arith.constant 0 : index
    %c0_93 = arith.constant 0 : index
    %360 = vector.load %arg10[%c0_92, %c0_93] : memref<1x2xf32, #tpu.memory_space<vmem>>, vector<1x2xf32>
    %361 = vector.broadcast %360 : vector<1x2xf32> to vector<2x2xf32>
    %362 = arith.addf %359, %361 : vector<2x2xf32>
    %c0_94 = arith.constant 0 : index
    %c0_95 = arith.constant 0 : index
    %363 = vector.load %arg12[%c0_94, %c0_95] : memref<2x2xf32, #tpu.memory_space<vmem>>, vector<2x2xf32>
    tpu.vector_store %arg12[%c0_94, %c0_95], %362 {strides = array<i32>} : memref<2x2xf32, #tpu.memory_space<vmem>>, vector<2x2xf32>,
    return
  }
}

</mosaic_0001>

<llo_original>
// kernel: tpu_custom_call.1
$region0: #{tpu_custom_call.1}
  #allocation0 [shape = 'u32[]', space=smem, size = 0x4, offset = 0x4, fixed_abs, tag = 'smem constant byte address 0x4 - core index']
  #allocation1 [shape = 'u32[72,128]{1,0:T(1,128)}', space=vmem, size = 0x9000, scoped, tag = 'internal scratch']
  #allocation2 [shape = 'f32[16,128]{1,0:T(8,128)}', space=vmem, size = 0x2000, scoped, tag = 'scratch operand']
  #allocation3 [shape = 'f32[16,32]{1,0:T(8,128)}', space=vmem, size = 0x2000, scoped, tag = 'scratch operand']
  %s0 = inlined_call_operand.hbm [shape: bf16[16,16], index: 0, kind: input, shape index: {}]
  %s1 = inlined_call_operand.hbm [shape: bf16[16,128], index: 1, kind: input, shape index: {}]
  %s2 = inlined_call_operand.vmem [shape: bf16[32,128], index: 2, kind: input, shape index: {}]
  %s3 = inlined_call_operand.vmem [shape: f32[1,128], index: 3, kind: input, shape index: {}]
  %s4 = inlined_call_operand.vmem [shape: bf16[64,128], index: 4, kind: input, shape index: {}]
  %s5 = inlined_call_operand.vmem [shape: f32[1,128], index: 5, kind: input, shape index: {}]
  %s6 = inlined_call_operand.hbm [shape: bf16[32,32], index: 6, kind: input, shape index: {}]
  %s7 = inlined_call_operand.vmem [shape: f32[1,32], index: 7, kind: input, shape index: {}]
  %s8 = inlined_call_operand.vmem [shape: f32[32,1], index: 8, kind: input, shape index: {}]
  %s9 = inlined_call_operand.vmem [shape: bf16[32,2], index: 9, kind: input, shape index: {}]
  %s10 = inlined_call_operand.vmem [shape: f32[1,2], index: 10, kind: input, shape index: {}]
  %s11 = inlined_call_operand.vmem [shape: f32[2,16], index: 11, kind: input, shape index: {}]
  %s12 = inlined_call_operand.hbm [shape: f32[2,2], index: 12, kind: output, shape index: {}]
  %s13 = sld [smem:[#allocation0]]
  $region70: #{tpu_custom_call.1} parent=0
    _
  %s15 = ssub.s32 1, %s13
  %s16 = scalar_select 0, %s15, %s13
  $region1: #{tpu_custom_call.1} parent=0
    #allocation4 [shape = 'u8[4096]{0}', space=vmem, size = 0x1000, scoped, tag = 'input window, operand 0, single buffered']
    #allocation5 [shape = 's32[1]{0}', space=sflag, size = 0x4, scoped, tag = 'scoped memory for tpu_custom_call.1']
    #allocation6 [shape = 's32[1]{0}', space=sflag, size = 0x4, scoped, tag = 'scoped memory for tpu_custom_call.1']
    #allocation7 [shape = 'u8[4096]{0}', space=vmem, size = 0x1000, scoped, tag = 'input window, operand 1, single buffered']
    #allocation8 [shape = 's32[1]{0}', space=sflag, size = 0x4, scoped, tag = 'scoped memory for tpu_custom_call.1']
    #allocation9 [shape = 'u8[8192]{0}', space=vmem, size = 0x2000, scoped, tag = 'input window, operand 6, single buffered']
    #allocation10 [shape = 'u8[1024]{0}', space=vmem, size = 0x400, scoped, tag = 'output window, operand 0, single buffered']
    %17 = vsyncpa [#allocation5], 0
    %18 = vsyncpa [#allocation8], 0
    %19 = vsyncpa [#allocation6], 0
    // Predicated region
    $region2: #{tpu_custom_call.1} parent=1 // pred_check
      _
    $region3: #{tpu_custom_call.1} parent=1 // pred_check_branch
      %21 = sbr.rel (0) target = $region5
    $region4: #{tpu_custom_call.1} parent=1 // pred_region
      %23 = vsyncadd [#allocation5], 0
      %s24 = sshll.u32 %s0, 4
      %s25 = int_to_ptr.hbm [resolvable:$true] %s24
      %s26 = sshll.u32 [#allocation4], 4
      %s27 = int_to_ptr.vmem [resolvable:$true] %s26
      %32 = dma.hbm_to_vmem [thread:$0]  %s25, 128, %s27, [#allocation5], 64, 64, 4
    $region5: #{tpu_custom_call.1} parent=1 // pred_fallthru
      _
    // Predicated region
    $region6: #{tpu_custom_call.1} parent=1 // pred_check
      _
    $region7: #{tpu_custom_call.1} parent=1 // pred_check_branch
      %34 = sbr.rel (0) target = $region9
    $region8: #{tpu_custom_call.1} parent=1 // pred_region
      %36 = vsyncadd [#allocation8], 0
      %s37 = sshll.u32 %s1, 4
      %s38 = int_to_ptr.hbm [resolvable:$true] %s37
      %s39 = sshll.u32 [#allocation7], 4
      %s40 = int_to_ptr.vmem [resolvable:$true] %s39
      %45 = dma.hbm_to_vmem [thread:$0]  %s38, 128, %s40, [#allocation8], 64, 64, 4
    $region9: #{tpu_custom_call.1} parent=1 // pred_fallthru
      _
    // Predicated region
    $region10: #{tpu_custom_call.1} parent=1 // pred_check
      _
    $region11: #{tpu_custom_call.1} parent=1 // pred_check_branch
      %47 = sbr.rel (0) target = $region13
    $region12: #{tpu_custom_call.1} parent=1 // pred_region
      _
    $region13: #{tpu_custom_call.1} parent=1 // pred_fallthru
      _
    // Predicated region
    $region14: #{tpu_custom_call.1} parent=1 // pred_check
      _
    $region15: #{tpu_custom_call.1} parent=1 // pred_check_branch
      %49 = sbr.rel (0) target = $region17
    $region16: #{tpu_custom_call.1} parent=1 // pred_region
      _
    $region17: #{tpu_custom_call.1} parent=1 // pred_fallthru
      _
    // Predicated region
    $region18: #{tpu_custom_call.1} parent=1 // pred_check
      _
    $region19: #{tpu_custom_call.1} parent=1 // pred_check_branch
      %51 = sbr.rel (0) target = $region21
    $region20: #{tpu_custom_call.1} parent=1 // pred_region
      _
    $region21: #{tpu_custom_call.1} parent=1 // pred_fallthru
      _
    // Predicated region
    $region22: #{tpu_custom_call.1} parent=1 // pred_check
      _
    $region23: #{tpu_custom_call.1} parent=1 // pred_check_branch
      %53 = sbr.rel (0) target = $region25
    $region24: #{tpu_custom_call.1} parent=1 // pred_region
      _
    $region25: #{tpu_custom_call.1} parent=1 // pred_fallthru
      _
    // Predicated region
    $region26: #{tpu_custom_call.1} parent=1 // pred_check
      _
    $region27: #{tpu_custom_call.1} parent=1 // pred_check_branch
      %55 = sbr.rel (0) target = $region29
    $region28: #{tpu_custom_call.1} parent=1 // pred_region
      %57 = vsyncadd [#allocation8], 0
      %s58 = sshll.u32 %s6, 4
      %s59 = int_to_ptr.hbm [resolvable:$true] %s58
      %s60 = sshll.u32 [#allocation9], 4
      %s61 = int_to_ptr.vmem [resolvable:$true] %s60
      %66 = dma.hbm_to_vmem [thread:$0]  %s59, 256, %s61, [#allocation8], 64, 64, 4
    $region29: #{tpu_custom_call.1} parent=1 // pred_fallthru
      _
    // Predicated region
    $region30: #{tpu_custom_call.1} parent=1 // pred_check
      _
    $region31: #{tpu_custom_call.1} parent=1 // pred_check_branch
      %68 = sbr.rel (0) target = $region33
    $region32: #{tpu_custom_call.1} parent=1 // pred_region
      _
    $region33: #{tpu_custom_call.1} parent=1 // pred_fallthru
      _
    // Predicated region
    $region34: #{tpu_custom_call.1} parent=1 // pred_check
      _
    $region35: #{tpu_custom_call.1} parent=1 // pred_check_branch
      %70 = sbr.rel (0) target = $region37
    $region36: #{tpu_custom_call.1} parent=1 // pred_region
      _
    $region37: #{tpu_custom_call.1} parent=1 // pred_fallthru
      _
    // Predicated region
    $region38: #{tpu_custom_call.1} parent=1 // pred_check
      _
    $region39: #{tpu_custom_call.1} parent=1 // pred_check_branch
      %72 = sbr.rel (0) target = $region41
    $region40: #{tpu_custom_call.1} parent=1 // pred_region
      _
    $region41: #{tpu_custom_call.1} parent=1 // pred_fallthru
      _
    // Predicated region
    $region42: #{tpu_custom_call.1} parent=1 // pred_check
      _
    $region43: #{tpu_custom_call.1} parent=1 // pred_check_branch
      %74 = sbr.rel (0) target = $region45
    $region44: #{tpu_custom_call.1} parent=1 // pred_region
      _
    $region45: #{tpu_custom_call.1} parent=1 // pred_fallthru
      _
    // Predicated region
    $region46: #{tpu_custom_call.1} parent=1 // pred_check
      _
    $region47: #{tpu_custom_call.1} parent=1 // pred_check_branch
      %76 = sbr.rel (0) target = $region49
    $region48: #{tpu_custom_call.1} parent=1 // pred_region
      _
    $region49: #{tpu_custom_call.1} parent=1 // pred_fallthru
      _
    // Predicated region
    $region50: #{tpu_custom_call.1} parent=1 // pred_check
      _
    $region51: #{tpu_custom_call.1} parent=1 // pred_check_branch
      %78 = sbr.rel (0) target = $region53
    $region52: #{tpu_custom_call.1} parent=1 // pred_region
      %80 = dma.done [#allocation5], 128
    $region53: #{tpu_custom_call.1} parent=1 // pred_fallthru
      _
    // Predicated region
    $region54: #{tpu_custom_call.1} parent=1 // pred_check
      _
    $region55: #{tpu_custom_call.1} parent=1 // pred_check_branch
      %82 = sbr.rel (0) target = $region57
    $region56: #{tpu_custom_call.1} parent=1 // pred_region
      %84 = dma.done [#allocation8], 128
    $region57: #{tpu_custom_call.1} parent=1 // pred_fallthru
      _
    // Predicated region
    $region58: #{tpu_custom_call.1} parent=1 // pred_check
      _
    $region59: #{tpu_custom_call.1} parent=1 // pred_check_branch
      %86 = sbr.rel (0) target = $region61
    $region60: #{tpu_custom_call.1} parent=1 // pred_region
      %88 = dma.done [#allocation8], 256
    $region61: #{tpu_custom_call.1} parent=1 // pred_fallthru
      _
    %v90 = vld [vmem:[#allocation4] sm:$0xf]
    %v91 = vld [vmem:[#allocation4 + $0x4] sm:$0xf]
    %v92 = vld [vmem:[#allocation7] sm:$0xf]
    %v93 = vld [vmem:[#allocation7 + $0x4] sm:$0xf]
    %v94 = vld [vmem:[%s3] sm:$0x1]
    %v96 = vperm.slane %v94, 0
    %v100 = vunpack.c.l.b16 %v90
    %v101 = vunpack.c.l.b16 %v91
    %v102 = vpack.c.b16 %v101, %v100
    %v105 = vunpack.c.l.b16 %v92
    %v106 = vunpack.c.l.b16 %v93
    %v107 = vpack.c.b16 %v106, %v105
    %vm109 = vcmask 130048
    %v111 = vsel %vm109, %v102, 0
    %113 = vmatpush.bf16.msra.mxu0 0
    %114 = vmatpush.bf16.msra.mxu0 0
    %115 = vmatpush.bf16.msra.mxu0 0
    %116 = vmatpush.bf16.msra.mxu0 0
    %117 = vmatpush.bf16.msra.mxu0 0
    %118 = vmatpush.bf16.msra.mxu0 0
    %119 = vmatpush.bf16.msra.mxu0 0
    %120 = vmatpush.bf16.msra.mxu0 %v107
    %121 = vmatmul.bf16.gmra.mxu0 %v111
    %v122 = vpop.f32.mrf.mxu0
    %v123 = vadd.f32 %v96, %v122
    %v124 = vpop.f32.mrf.mxu0
    %v125 = vadd.f32 %v96, %v124
    %126 = vdwg.mxu0
    %127 = vst [vmem:[#allocation2] sm:$0xff] %v123
    %128 = vst [vmem:[#allocation2 + $0x8] sm:$0xff] %v125
    %v129 = vld [vmem:[%s2] sm:$0xf]
    %v130 = vld [vmem:[%s2 + $0x4] sm:$0xf]
    %v131 = vld [vmem:[%s2 + $0x8] sm:$0xf]
    %v132 = vld [vmem:[%s2 + $0xc] sm:$0xf]
    %v133 = vld [vmem:[%s4] sm:$0xf]
    %v134 = vld [vmem:[%s4 + $0x4] sm:$0xf]
    %v135 = vld [vmem:[%s4 + $0x8] sm:$0xf]
    %v136 = vld [vmem:[%s4 + $0xc] sm:$0xf]
    %v137 = vld [vmem:[%s4 + $0x10] sm:$0xf]
    %v138 = vld [vmem:[%s4 + $0x14] sm:$0xf]
    %v139 = vld [vmem:[%s4 + $0x18] sm:$0xf]
    %v140 = vld [vmem:[%s4 + $0x1c] sm:$0xf]
    %v141 = vld [vmem:[%s5] sm:$0x1]
    %v142 = vld [vmem:[#allocation2] sm:$0x3]
    %v147 = vunpack.c.l.b16 %v129
    %v148 = vunpack.c.l.b16 %v130
    %v149 = vunpack.c.l.b16 %v131
    %v150 = vunpack.c.l.b16 %v132
    %v151 = vpack.c.b16 %v148, %v147
    %v152 = vpack.c.b16 %v150, %v149
    %vm155 = vcmask 261120
    %v157 = vsel %vm155, 0, 0
    %159 = vmatpush.bf16.msra.mxu0 0
    %160 = vmatpush.bf16.msra.mxu0 0
    %161 = vmatpush.bf16.msra.mxu0 0
    %162 = vmatpush.bf16.msra.mxu0 0
    %163 = vmatpush.bf16.msra.mxu0 0
    %164 = vmatpush.bf16.msra.mxu0 0
    %165 = vmatpush.bf16.msra.mxu0 %v152
    %166 = vmatpush.bf16.msra.mxu0 %v151
    %167 = vmatmul.bf16.gmra.mxu0 %v157
    %v168 = vpop.f32.mrf.mxu0
    %v169 = vadd.f32 0.0, %v168
    %v170 = vpop.f32.mrf.mxu0
    %171 = vdwg.mxu0
    %v172 = vadd.f32 %v142, %v169
    %v173 = vxor.u32 %v172, 2147483648
    %v174 = vmul.f32 %v173, 1.442695
    %v175 = vpow.pop %v174
    %v176 = vadd.f32 %v175, 1.0
    %v177 = vrcp.pop %v176
    %v178 = vmul.f32 %v176, %v177
    %v179 = vsub.f32 1.0, %v178
    %v180 = vmul.f32 %v177, %v179
    %v181 = vadd.f32 %v177, %v180
    %vm182 = vweird.f32 %v176
    %vm183 = vweird.f32 %v177
    %vm184 = vmor %vm182, %vm183
    %v185 = vsel %vm184, %v177, %v181
    %v186 = vand.u32 2147483647, %v176
    %vm187 = vcmp.eq.f32.partialorder %v186, 8.507059e+37
    %v188 = vand.u32 %v176, 2147483648
    %v189 = vor.u32 1.1754944e-38, %v188
    %v190 = vsel %vm187, %v189, %v185
    %v191 = vmul.f32 1.0, %v190
    %v192 = vtanh.pop %v172
    %v193 = vmul.f32 %v191, 0.0
    %195 = vrot.lane.b32.xlu0 %v192, 64
    %v196 = vpop.permute.xlu0 %195
    %v198 = vmul.f32 %v191, %v196
    %200 = vrot.lane.b32.xlu0 %v198, 32
    %v201 = vpop.permute.xlu0 %200
    %v203 = vadd.f32 %v193, %v201
    %v204 = vtanh.pop %v203
    %206 = vrot.lane.b32.xlu0 %v204, 64
    %v207 = vpop.permute.xlu0 %206
    %v209 = vmul.f32 %v191, %v207
    %211 = vrot.lane.b32.xlu0 %v209, 32
    %v212 = vpop.permute.xlu0 %211
    %v214 = vsel %vm155, %v212, 0.0
    %v215 = vpack.c.bf16 %v214, %v214
    %v217 = vperm.slane %v141, 0
    %v227 = vunpack.c.l.b16 %v133
    %v228 = vunpack.c.l.b16 %v134
    %v229 = vunpack.c.l.b16 %v135
    %v230 = vunpack.c.l.b16 %v136
    %v231 = vunpack.c.l.b16 %v137
    %v232 = vunpack.c.l.b16 %v138
    %v233 = vunpack.c.l.b16 %v139
    %v234 = vunpack.c.l.b16 %v140
    %v235 = vpack.c.b16 %v228, %v227
    %v236 = vpack.c.b16 %v230, %v229
    %v237 = vpack.c.b16 %v232, %v231
    %v238 = vpack.c.b16 %v234, %v233
    %vm243 = vcmask 523264
    %v245 = vsel %vm243, %v215, 0
    %247 = vmatpush.bf16.msra.mxu0 0
    %248 = vmatpush.bf16.msra.mxu0 0
    %249 = vmatpush.bf16.msra.mxu0 0
    %250 = vmatpush.bf16.msra.mxu0 0
    %251 = vmatpush.bf16.msra.mxu0 %v238
    %252 = vmatpush.bf16.msra.mxu0 %v237
    %253 = vmatpush.bf16.msra.mxu0 %v236
    %254 = vmatpush.bf16.msra.mxu0 %v235
    %255 = vmatmul.bf16.gmra.mxu0 %v245
    %v256 = vpop.f32.mrf.mxu0
    %v257 = vadd.f32 %v217, %v256
    %v258 = vpop.f32.mrf.mxu0
    %259 = vdwg.mxu0
    %v260 = vxor.u32 %v257, 2147483648
    %v261 = vmul.f32 %v260, 1.442695
    %v262 = vpow.pop %v261
    %v263 = vadd.f32 %v262, 1.0
    %v264 = vrcp.pop %v263
    %v265 = vmul.f32 %v263, %v264
    %v266 = vsub.f32 1.0, %v265
    %v267 = vmul.f32 %v264, %v266
    %v268 = vadd.f32 %v264, %v267
    %vm269 = vweird.f32 %v263
    %vm270 = vweird.f32 %v264
    %vm271 = vmor %vm269, %vm270
    %v272 = vsel %vm271, %v264, %v268
    %v273 = vand.u32 2147483647, %v263
    %vm274 = vcmp.eq.f32.partialorder %v273, 8.507059e+37
    %v275 = vand.u32 %v263, 2147483648
    %v276 = vor.u32 1.1754944e-38, %v275
    %v277 = vsel %vm274, %v276, %v272
    %v278 = vmul.f32 1.0, %v277
    %v279 = vtanh.pop %v257
    %v280 = vmul.f32 %v278, 0.0
    %282 = vrot.lane.b32.xlu0 %v279, 64
    %v283 = vpop.permute.xlu0 %282
    %v285 = vmul.f32 %v278, %v283
    %287 = vrot.lane.b32.xlu0 %v285, 32
    %v288 = vpop.permute.xlu0 %287
    %v290 = vadd.f32 %v280, %v288
    %v291 = vtanh.pop %v290
    %293 = vrot.lane.b32.xlu0 %v291, 64
    %v294 = vpop.permute.xlu0 %293
    %v296 = vmul.f32 %v278, %v294
    %298 = vrot.lane.b32.xlu0 %v296, 32
    %v299 = vpop.permute.xlu0 %298
    %vm301 = vcmask 254976
    %302 = vst.msk [vmem:[#allocation3] sm:$0x3] %vm301, %v299
    %v303 = vld [vmem:[#allocation2 + $0x2] sm:$0x3]
    %v304 = vpack.c.bf16 %v209, %v209
    %306 = vrot.lane.b32.xlu0 %v304, 32
    %v307 = vpop.permute.xlu0 %306
    %v309 = vsel %vm155, %v307, 0
    %311 = vmatpush.bf16.msra.mxu0 0
    %312 = vmatpush.bf16.msra.mxu0 0
    %313 = vmatpush.bf16.msra.mxu0 0
    %314 = vmatpush.bf16.msra.mxu0 0
    %315 = vmatpush.bf16.msra.mxu0 0
    %316 = vmatpush.bf16.msra.mxu0 0
    %317 = vmatpush.bf16.msra.mxu0 %v152
    %318 = vmatpush.bf16.msra.mxu0 %v151
    %319 = vmatmul.bf16.gmra.mxu0 %v309
    %v320 = vpop.f32.mrf.mxu0
    %v321 = vadd.f32 0.0, %v320
    %v322 = vpop.f32.mrf.mxu0
    %323 = vdwg.mxu0
    %v324 = vadd.f32 %v303, %v321
    %v325 = vxor.u32 %v324, 2147483648
    %v326 = vmul.f32 %v325, 1.442695
    %v327 = vpow.pop %v326
    %v328 = vadd.f32 %v327, 1.0
    %v329 = vrcp.pop %v328
    %v330 = vmul.f32 %v328, %v329
    %v331 = vsub.f32 1.0, %v330
    %v332 = vmul.f32 %v329, %v331
    %v333 = vadd.f32 %v329, %v332
    %vm334 = vweird.f32 %v328
    %vm335 = vweird.f32 %v329
    %vm336 = vmor %vm334, %vm335
    %v337 = vsel %vm336, %v329, %v333
    %v338 = vand.u32 2147483647, %v328
    %vm339 = vcmp.eq.f32.partialorder %v338, 8.507059e+37
    %v340 = vand.u32 %v328, 2147483648
    %v341 = vor.u32 1.1754944e-38, %v340
    %v342 = vsel %vm339, %v341, %v337
    %v343 = vmul.f32 1.0, %v342
    %v344 = vtanh.pop %v324
    %v345 = vmul.f32 %v343, %v203
    %347 = vrot.lane.b32.xlu0 %v344, 64
    %v348 = vpop.permute.xlu0 %347
    %v350 = vmul.f32 %v343, %v348
    %352 = vrot.lane.b32.xlu0 %v350, 32
    %v353 = vpop.permute.xlu0 %352
    %v355 = vadd.f32 %v345, %v353
    %v356 = vtanh.pop %v355
    %358 = vrot.lane.b32.xlu0 %v356, 64
    %v359 = vpop.permute.xlu0 %358
    %v361 = vmul.f32 %v343, %v359
    %363 = vrot.lane.b32.xlu0 %v361, 32
    %v364 = vpop.permute.xlu0 %363
    %366 = vrot.lane.b32.xlu0 %v296, 64
    %v367 = vpop.permute.xlu0 %366
    %v369 = vsel %vm155, %v364, %v367
    %v370 = vpack.c.bf16 %v369, %v369
    %v372 = vsel %vm243, %v370, 0
    %374 = vmatpush.bf16.msra.mxu0 0
    %375 = vmatpush.bf16.msra.mxu0 0
    %376 = vmatpush.bf16.msra.mxu0 0
    %377 = vmatpush.bf16.msra.mxu0 0
    %378 = vmatpush.bf16.msra.mxu0 %v238
    %379 = vmatpush.bf16.msra.mxu0 %v237
    %380 = vmatpush.bf16.msra.mxu0 %v236
    %381 = vmatpush.bf16.msra.mxu0 %v235
    %382 = vmatmul.bf16.gmra.mxu0 %v372
    %v383 = vpop.f32.mrf.mxu0
    %v384 = vadd.f32 %v217, %v383
    %v385 = vpop.f32.mrf.mxu0
    %386 = vdwg.mxu0
    %v387 = vxor.u32 %v384, 2147483648
    %v388 = vmul.f32 %v387, 1.442695
    %v389 = vpow.pop %v388
    %v390 = vadd.f32 %v389, 1.0
    %v391 = vrcp.pop %v390
    %v392 = vmul.f32 %v390, %v391
    %v393 = vsub.f32 1.0, %v392
    %v394 = vmul.f32 %v391, %v393
    %v395 = vadd.f32 %v391, %v394
    %vm396 = vweird.f32 %v390
    %vm397 = vweird.f32 %v391
    %vm398 = vmor %vm396, %vm397
    %v399 = vsel %vm398, %v391, %v395
    %v400 = vand.u32 2147483647, %v390
    %vm401 = vcmp.eq.f32.partialorder %v400, 8.507059e+37
    %v402 = vand.u32 %v390, 2147483648
    %v403 = vor.u32 1.1754944e-38, %v402
    %v404 = vsel %vm401, %v403, %v399
    %v405 = vmul.f32 1.0, %v404
    %v406 = vtanh.pop %v384
    %v407 = vmul.f32 %v405, %v290
    %409 = vrot.lane.b32.xlu0 %v406, 64
    %v410 = vpop.permute.xlu0 %409
    %v412 = vmul.f32 %v405, %v410
    %414 = vrot.lane.b32.xlu0 %v412, 32
    %v415 = vpop.permute.xlu0 %414
    %v417 = vadd.f32 %v407, %v415
    %v418 = vtanh.pop %v417
    %420 = vrot.lane.b32.xlu0 %v418, 64
    %v421 = vpop.permute.xlu0 %420
    %v423 = vmul.f32 %v405, %v421
    %425 = vrot.lane.b32.xlu0 %v423, 32
    %v426 = vpop.permute.xlu0 %425
    %428 = vst.msk [vmem:[#allocation3 + $0x2] sm:$0x3] %vm301, %v426
    %v429 = vld [vmem:[#allocation2 + $0x4] sm:$0x3]
    %v430 = vpack.c.bf16 %v361, %v361
    %432 = vrot.lane.b32.xlu0 %v430, 32
    %v433 = vpop.permute.xlu0 %432
    %v435 = vsel %vm155, %v433, 0
    %437 = vmatpush.bf16.msra.mxu0 0
    %438 = vmatpush.bf16.msra.mxu0 0
    %439 = vmatpush.bf16.msra.mxu0 0
    %440 = vmatpush.bf16.msra.mxu0 0
    %441 = vmatpush.bf16.msra.mxu0 0
    %442 = vmatpush.bf16.msra.mxu0 0
    %443 = vmatpush.bf16.msra.mxu0 %v152
    %444 = vmatpush.bf16.msra.mxu0 %v151
    %445 = vmatmul.bf16.gmra.mxu0 %v435
    %v446 = vpop.f32.mrf.mxu0
    %v447 = vadd.f32 0.0, %v446
    %v448 = vpop.f32.mrf.mxu0
    %449 = vdwg.mxu0
    %v450 = vadd.f32 %v429, %v447
    %v451 = vxor.u32 %v450, 2147483648
    %v452 = vmul.f32 %v451, 1.442695
    %v453 = vpow.pop %v452
    %v454 = vadd.f32 %v453, 1.0
    %v455 = vrcp.pop %v454
    %v456 = vmul.f32 %v454, %v455
    %v457 = vsub.f32 1.0, %v456
    %v458 = vmul.f32 %v455, %v457
    %v459 = vadd.f32 %v455, %v458
    %vm460 = vweird.f32 %v454
    %vm461 = vweird.f32 %v455
    %vm462 = vmor %vm460, %vm461
    %v463 = vsel %vm462, %v455, %v459
    %v464 = vand.u32 2147483647, %v454
    %vm465 = vcmp.eq.f32.partialorder %v464, 8.507059e+37
    %v466 = vand.u32 %v454, 2147483648
    %v467 = vor.u32 1.1754944e-38, %v466
    %v468 = vsel %vm465, %v467, %v463
    %v469 = vmul.f32 1.0, %v468
    %v470 = vtanh.pop %v450
    %v471 = vmul.f32 %v469, %v355
    %473 = vrot.lane.b32.xlu0 %v470, 64
    %v474 = vpop.permute.xlu0 %473
    %v476 = vmul.f32 %v469, %v474
    %478 = vrot.lane.b32.xlu0 %v476, 32
    %v479 = vpop.permute.xlu0 %478
    %v481 = vadd.f32 %v471, %v479
    %v482 = vtanh.pop %v481
    %484 = vrot.lane.b32.xlu0 %v482, 64
    %v485 = vpop.permute.xlu0 %484
    %v487 = vmul.f32 %v469, %v485
    %489 = vrot.lane.b32.xlu0 %v487, 32
    %v490 = vpop.permute.xlu0 %489
    %492 = vrot.lane.b32.xlu0 %v423, 64
    %v493 = vpop.permute.xlu0 %492
    %v495 = vsel %vm155, %v490, %v493
    %v496 = vpack.c.bf16 %v495, %v495
    %v498 = vsel %vm243, %v496, 0
    %500 = vmatpush.bf16.msra.mxu0 0
    %501 = vmatpush.bf16.msra.mxu0 0
    %502 = vmatpush.bf16.msra.mxu0 0
    %503 = vmatpush.bf16.msra.mxu0 0
    %504 = vmatpush.bf16.msra.mxu0 %v238
    %505 = vmatpush.bf16.msra.mxu0 %v237
    %506 = vmatpush.bf16.msra.mxu0 %v236
    %507 = vmatpush.bf16.msra.mxu0 %v235
    %508 = vmatmul.bf16.gmra.mxu0 %v498
    %v509 = vpop.f32.mrf.mxu0
    %v510 = vadd.f32 %v217, %v509
    %v511 = vpop.f32.mrf.mxu0
    %512 = vdwg.mxu0
    %v513 = vxor.u32 %v510, 2147483648
    %v514 = vmul.f32 %v513, 1.442695
    %v515 = vpow.pop %v514
    %v516 = vadd.f32 %v515, 1.0
    %v517 = vrcp.pop %v516
    %v518 = vmul.f32 %v516, %v517
    %v519 = vsub.f32 1.0, %v518
    %v520 = vmul.f32 %v517, %v519
    %v521 = vadd.f32 %v517, %v520
    %vm522 = vweird.f32 %v516
    %vm523 = vweird.f32 %v517
    %vm524 = vmor %vm522, %vm523
    %v525 = vsel %vm524, %v517, %v521
    %v526 = vand.u32 2147483647, %v516
    %vm527 = vcmp.eq.f32.partialorder %v526, 8.507059e+37
    %v528 = vand.u32 %v516, 2147483648
    %v529 = vor.u32 1.1754944e-38, %v528
    %v530 = vsel %vm527, %v529, %v525
    %v531 = vmul.f32 1.0, %v530
    %v532 = vtanh.pop %v510
    %v533 = vmul.f32 %v531, %v417
    %535 = vrot.lane.b32.xlu0 %v532, 64
    %v536 = vpop.permute.xlu0 %535
    %v538 = vmul.f32 %v531, %v536
    %540 = vrot.lane.b32.xlu0 %v538, 32
    %v541 = vpop.permute.xlu0 %540
    %v543 = vadd.f32 %v533, %v541
    %v544 = vtanh.pop %v543
    %546 = vrot.lane.b32.xlu0 %v544, 64
    %v547 = vpop.permute.xlu0 %546
    %v549 = vmul.f32 %v531, %v547
    %551 = vrot.lane.b32.xlu0 %v549, 32
    %v552 = vpop.permute.xlu0 %551
    %554 = vst.msk [vmem:[#allocation3 + $0x4] sm:$0x3] %vm301, %v552
    %v555 = vld [vmem:[#allocation2 + $0x6] sm:$0x3]
    %v556 = vpack.c.bf16 %v487, %v487
    %558 = vrot.lane.b32.xlu0 %v556, 32
    %v559 = vpop.permute.xlu0 %558
    %v561 = vsel %vm155, %v559, 0
    %563 = vmatpush.bf16.msra.mxu0 0
    %564 = vmatpush.bf16.msra.mxu0 0
    %565 = vmatpush.bf16.msra.mxu0 0
    %566 = vmatpush.bf16.msra.mxu0 0
    %567 = vmatpush.bf16.msra.mxu0 0
    %568 = vmatpush.bf16.msra.mxu0 0
    %569 = vmatpush.bf16.msra.mxu0 %v152
    %570 = vmatpush.bf16.msra.mxu0 %v151
    %571 = vmatmul.bf16.gmra.mxu0 %v561
    %v572 = vpop.f32.mrf.mxu0
    %v573 = vadd.f32 0.0, %v572
    %v574 = vpop.f32.mrf.mxu0
    %575 = vdwg.mxu0
    %v576 = vadd.f32 %v555, %v573
    %v577 = vxor.u32 %v576, 2147483648
    %v578 = vmul.f32 %v577, 1.442695
    %v579 = vpow.pop %v578
    %v580 = vadd.f32 %v579, 1.0
    %v581 = vrcp.pop %v580
    %v582 = vmul.f32 %v580, %v581
    %v583 = vsub.f32 1.0, %v582
    %v584 = vmul.f32 %v581, %v583
    %v585 = vadd.f32 %v581, %v584
    %vm586 = vweird.f32 %v580
    %vm587 = vweird.f32 %v581
    %vm588 = vmor %vm586, %vm587
    %v589 = vsel %vm588, %v581, %v585
    %v590 = vand.u32 2147483647, %v580
    %vm591 = vcmp.eq.f32.partialorder %v590, 8.507059e+37
    %v592 = vand.u32 %v580, 2147483648
    %v593 = vor.u32 1.1754944e-38, %v592
    %v594 = vsel %vm591, %v593, %v589
    %v595 = vmul.f32 1.0, %v594
    %v596 = vtanh.pop %v576
    %v597 = vmul.f32 %v595, %v481
    %599 = vrot.lane.b32.xlu0 %v596, 64
    %v600 = vpop.permute.xlu0 %599
    %v602 = vmul.f32 %v595, %v600
    %604 = vrot.lane.b32.xlu0 %v602, 32
    %v605 = vpop.permute.xlu0 %604
    %v607 = vadd.f32 %v597, %v605
    %v608 = vtanh.pop %v607
    %610 = vrot.lane.b32.xlu0 %v608, 64
    %v611 = vpop.permute.xlu0 %610
    %v613 = vmul.f32 %v595, %v611
    %615 = vrot.lane.b32.xlu0 %v613, 32
    %v616 = vpop.permute.xlu0 %615
    %618 = vrot.lane.b32.xlu0 %v549, 64
    %v619 = vpop.permute.xlu0 %618
    %v621 = vsel %vm155, %v616, %v619
    %v622 = vpack.c.bf16 %v621, %v621
    %v624 = vsel %vm243, %v622, 0
    %626 = vmatpush.bf16.msra.mxu0 0
    %627 = vmatpush.bf16.msra.mxu0 0
    %628 = vmatpush.bf16.msra.mxu0 0
    %629 = vmatpush.bf16.msra.mxu0 0
    %630 = vmatpush.bf16.msra.mxu0 %v238
    %631 = vmatpush.bf16.msra.mxu0 %v237
    %632 = vmatpush.bf16.msra.mxu0 %v236
    %633 = vmatpush.bf16.msra.mxu0 %v235
    %634 = vmatmul.bf16.gmra.mxu0 %v624
    %v635 = vpop.f32.mrf.mxu0
    %v636 = vadd.f32 %v217, %v635
    %v637 = vpop.f32.mrf.mxu0
    %638 = vdwg.mxu0
    %v639 = vxor.u32 %v636, 2147483648
    %v640 = vmul.f32 %v639, 1.442695
    %v641 = vpow.pop %v640
    %v642 = vadd.f32 %v641, 1.0
    %v643 = vrcp.pop %v642
    %v644 = vmul.f32 %v642, %v643
    %v645 = vsub.f32 1.0, %v644
    %v646 = vmul.f32 %v643, %v645
    %v647 = vadd.f32 %v643, %v646
    %vm648 = vweird.f32 %v642
    %vm649 = vweird.f32 %v643
    %vm650 = vmor %vm648, %vm649
    %v651 = vsel %vm650, %v643, %v647
    %v652 = vand.u32 2147483647, %v642
    %vm653 = vcmp.eq.f32.partialorder %v652, 8.507059e+37
    %v654 = vand.u32 %v642, 2147483648
    %v655 = vor.u32 1.1754944e-38, %v654
    %v656 = vsel %vm653, %v655, %v651
    %v657 = vmul.f32 1.0, %v656
    %v658 = vtanh.pop %v636
    %v659 = vmul.f32 %v657, %v543
    %661 = vrot.lane.b32.xlu0 %v658, 64
    %v662 = vpop.permute.xlu0 %661
    %v664 = vmul.f32 %v657, %v662
    %666 = vrot.lane.b32.xlu0 %v664, 32
    %v667 = vpop.permute.xlu0 %666
    %v669 = vadd.f32 %v659, %v667
    %v670 = vtanh.pop %v669
    %672 = vrot.lane.b32.xlu0 %v670, 64
    %v673 = vpop.permute.xlu0 %672
    %v675 = vmul.f32 %v657, %v673
    %677 = vrot.lane.b32.xlu0 %v675, 32
    %v678 = vpop.permute.xlu0 %677
    %680 = vst.msk [vmem:[#allocation3 + $0x6] sm:$0x3] %vm301, %v678
    %v681 = vld [vmem:[#allocation2 + $0x8] sm:$0x3]
    %v682 = vpack.c.bf16 %v613, %v613
    %684 = vrot.lane.b32.xlu0 %v682, 32
    %v685 = vpop.permute.xlu0 %684
    %v687 = vsel %vm155, %v685, 0
    %689 = vmatpush.bf16.msra.mxu0 0
    %690 = vmatpush.bf16.msra.mxu0 0
    %691 = vmatpush.bf16.msra.mxu0 0
    %692 = vmatpush.bf16.msra.mxu0 0
    %693 = vmatpush.bf16.msra.mxu0 0
    %694 = vmatpush.bf16.msra.mxu0 0
    %695 = vmatpush.bf16.msra.mxu0 %v152
    %696 = vmatpush.bf16.msra.mxu0 %v151
    %697 = vmatmul.bf16.gmra.mxu0 %v687
    %v698 = vpop.f32.mrf.mxu0
    %v699 = vadd.f32 0.0, %v698
    %v700 = vpop.f32.mrf.mxu0
    %701 = vdwg.mxu0
    %v702 = vadd.f32 %v681, %v699
    %v703 = vxor.u32 %v702, 2147483648
    %v704 = vmul.f32 %v703, 1.442695
    %v705 = vpow.pop %v704
    %v706 = vadd.f32 %v705, 1.0
    %v707 = vrcp.pop %v706
    %v708 = vmul.f32 %v706, %v707
    %v709 = vsub.f32 1.0, %v708
    %v710 = vmul.f32 %v707, %v709
    %v711 = vadd.f32 %v707, %v710
    %vm712 = vweird.f32 %v706
    %vm713 = vweird.f32 %v707
    %vm714 = vmor %vm712, %vm713
    %v715 = vsel %vm714, %v707, %v711
    %v716 = vand.u32 2147483647, %v706
    %vm717 = vcmp.eq.f32.partialorder %v716, 8.507059e+37
    %v718 = vand.u32 %v706, 2147483648
    %v719 = vor.u32 1.1754944e-38, %v718
    %v720 = vsel %vm717, %v719, %v715
    %v721 = vmul.f32 1.0, %v720
    %v722 = vtanh.pop %v702
    %v723 = vmul.f32 %v721, %v607
    %725 = vrot.lane.b32.xlu0 %v722, 64
    %v726 = vpop.permute.xlu0 %725
    %v728 = vmul.f32 %v721, %v726
    %730 = vrot.lane.b32.xlu0 %v728, 32
    %v731 = vpop.permute.xlu0 %730
    %v733 = vadd.f32 %v723, %v731
    %v734 = vtanh.pop %v733
    %736 = vrot.lane.b32.xlu0 %v734, 64
    %v737 = vpop.permute.xlu0 %736
    %v739 = vmul.f32 %v721, %v737
    %741 = vrot.lane.b32.xlu0 %v739, 32
    %v742 = vpop.permute.xlu0 %741
    %744 = vrot.lane.b32.xlu0 %v675, 64
    %v745 = vpop.permute.xlu0 %744
    %v747 = vsel %vm155, %v742, %v745
    %v748 = vpack.c.bf16 %v747, %v747
    %v750 = vsel %vm243, %v748, 0
    %752 = vmatpush.bf16.msra.mxu0 0
    %753 = vmatpush.bf16.msra.mxu0 0
    %754 = vmatpush.bf16.msra.mxu0 0
    %755 = vmatpush.bf16.msra.mxu0 0
    %756 = vmatpush.bf16.msra.mxu0 %v238
    %757 = vmatpush.bf16.msra.mxu0 %v237
    %758 = vmatpush.bf16.msra.mxu0 %v236
    %759 = vmatpush.bf16.msra.mxu0 %v235
    %760 = vmatmul.bf16.gmra.mxu0 %v750
    %v761 = vpop.f32.mrf.mxu0
    %v762 = vadd.f32 %v217, %v761
    %v763 = vpop.f32.mrf.mxu0
    %764 = vdwg.mxu0
    %v765 = vxor.u32 %v762, 2147483648
    %v766 = vmul.f32 %v765, 1.442695
    %v767 = vpow.pop %v766
    %v768 = vadd.f32 %v767, 1.0
    %v769 = vrcp.pop %v768
    %v770 = vmul.f32 %v768, %v769
    %v771 = vsub.f32 1.0, %v770
    %v772 = vmul.f32 %v769, %v771
    %v773 = vadd.f32 %v769, %v772
    %vm774 = vweird.f32 %v768
    %vm775 = vweird.f32 %v769
    %vm776 = vmor %vm774, %vm775
    %v777 = vsel %vm776, %v769, %v773
    %v778 = vand.u32 2147483647, %v768
    %vm779 = vcmp.eq.f32.partialorder %v778, 8.507059e+37
    %v780 = vand.u32 %v768, 2147483648
    %v781 = vor.u32 1.1754944e-38, %v780
    %v782 = vsel %vm779, %v781, %v777
    %v783 = vmul.f32 1.0, %v782
    %v784 = vtanh.pop %v762
    %v785 = vmul.f32 %v783, %v669
    %787 = vrot.lane.b32.xlu0 %v784, 64
    %v788 = vpop.permute.xlu0 %787
    %v790 = vmul.f32 %v783, %v788
    %792 = vrot.lane.b32.xlu0 %v790, 32
    %v793 = vpop.permute.xlu0 %792
    %v795 = vadd.f32 %v785, %v793
    %v796 = vtanh.pop %v795
    %798 = vrot.lane.b32.xlu0 %v796, 64
    %v799 = vpop.permute.xlu0 %798
    %v801 = vmul.f32 %v783, %v799
    %803 = vrot.lane.b32.xlu0 %v801, 32
    %v804 = vpop.permute.xlu0 %803
    %806 = vst.msk [vmem:[#allocation3 + $0x8] sm:$0x3] %vm301, %v804
    %v807 = vld [vmem:[#allocation2 + $0xa] sm:$0x3]
    %v808 = vpack.c.bf16 %v739, %v739
    %810 = vrot.lane.b32.xlu0 %v808, 32
    %v811 = vpop.permute.xlu0 %810
    %v813 = vsel %vm155, %v811, 0
    %815 = vmatpush.bf16.msra.mxu0 0
    %816 = vmatpush.bf16.msra.mxu0 0
    %817 = vmatpush.bf16.msra.mxu0 0
    %818 = vmatpush.bf16.msra.mxu0 0
    %819 = vmatpush.bf16.msra.mxu0 0
    %820 = vmatpush.bf16.msra.mxu0 0
    %821 = vmatpush.bf16.msra.mxu0 %v152
    %822 = vmatpush.bf16.msra.mxu0 %v151
    %823 = vmatmul.bf16.gmra.mxu0 %v813
    %v824 = vpop.f32.mrf.mxu0
    %v825 = vadd.f32 0.0, %v824
    %v826 = vpop.f32.mrf.mxu0
    %827 = vdwg.mxu0
    %v828 = vadd.f32 %v807, %v825
    %v829 = vxor.u32 %v828, 2147483648
    %v830 = vmul.f32 %v829, 1.442695
    %v831 = vpow.pop %v830
    %v832 = vadd.f32 %v831, 1.0
    %v833 = vrcp.pop %v832
    %v834 = vmul.f32 %v832, %v833
    %v835 = vsub.f32 1.0, %v834
    %v836 = vmul.f32 %v833, %v835
    %v837 = vadd.f32 %v833, %v836
    %vm838 = vweird.f32 %v832
    %vm839 = vweird.f32 %v833
    %vm840 = vmor %vm838, %vm839
    %v841 = vsel %vm840, %v833, %v837
    %v842 = vand.u32 2147483647, %v832
    %vm843 = vcmp.eq.f32.partialorder %v842, 8.507059e+37
    %v844 = vand.u32 %v832, 2147483648
    %v845 = vor.u32 1.1754944e-38, %v844
    %v846 = vsel %vm843, %v845, %v841
    %v847 = vmul.f32 1.0, %v846
    %v848 = vtanh.pop %v828
    %v849 = vmul.f32 %v847, %v733
    %851 = vrot.lane.b32.xlu0 %v848, 64
    %v852 = vpop.permute.xlu0 %851
    %v854 = vmul.f32 %v847, %v852
    %856 = vrot.lane.b32.xlu0 %v854, 32
    %v857 = vpop.permute.xlu0 %856
    %v859 = vadd.f32 %v849, %v857
    %v860 = vtanh.pop %v859
    %862 = vrot.lane.b32.xlu0 %v860, 64
    %v863 = vpop.permute.xlu0 %862
    %v865 = vmul.f32 %v847, %v863
    %867 = vrot.lane.b32.xlu0 %v865, 32
    %v868 = vpop.permute.xlu0 %867
    %870 = vrot.lane.b32.xlu0 %v801, 64
    %v871 = vpop.permute.xlu0 %870
    %v873 = vsel %vm155, %v868, %v871
    %v874 = vpack.c.bf16 %v873, %v873
    %v876 = vsel %vm243, %v874, 0
    %878 = vmatpush.bf16.msra.mxu0 0
    %879 = vmatpush.bf16.msra.mxu0 0
    %880 = vmatpush.bf16.msra.mxu0 0
    %881 = vmatpush.bf16.msra.mxu0 0
    %882 = vmatpush.bf16.msra.mxu0 %v238
    %883 = vmatpush.bf16.msra.mxu0 %v237
    %884 = vmatpush.bf16.msra.mxu0 %v236
    %885 = vmatpush.bf16.msra.mxu0 %v235
    %886 = vmatmul.bf16.gmra.mxu0 %v876
    %v887 = vpop.f32.mrf.mxu0
    %v888 = vadd.f32 %v217, %v887
    %v889 = vpop.f32.mrf.mxu0
    %890 = vdwg.mxu0
    %v891 = vxor.u32 %v888, 2147483648
    %v892 = vmul.f32 %v891, 1.442695
    %v893 = vpow.pop %v892
    %v894 = vadd.f32 %v893, 1.0
    %v895 = vrcp.pop %v894
    %v896 = vmul.f32 %v894, %v895
    %v897 = vsub.f32 1.0, %v896
    %v898 = vmul.f32 %v895, %v897
    %v899 = vadd.f32 %v895, %v898
    %vm900 = vweird.f32 %v894
    %vm901 = vweird.f32 %v895
    %vm902 = vmor %vm900, %vm901
    %v903 = vsel %vm902, %v895, %v899
    %v904 = vand.u32 2147483647, %v894
    %vm905 = vcmp.eq.f32.partialorder %v904, 8.507059e+37
    %v906 = vand.u32 %v894, 2147483648
    %v907 = vor.u32 1.1754944e-38, %v906
    %v908 = vsel %vm905, %v907, %v903
    %v909 = vmul.f32 1.0, %v908
    %v910 = vtanh.pop %v888
    %v911 = vmul.f32 %v909, %v795
    %913 = vrot.lane.b32.xlu0 %v910, 64
    %v914 = vpop.permute.xlu0 %913
    %v916 = vmul.f32 %v909, %v914
    %918 = vrot.lane.b32.xlu0 %v916, 32
    %v919 = vpop.permute.xlu0 %918
    %v921 = vadd.f32 %v911, %v919
    %v922 = vtanh.pop %v921
    %924 = vrot.lane.b32.xlu0 %v922, 64
    %v925 = vpop.permute.xlu0 %924
    %v927 = vmul.f32 %v909, %v925
    %929 = vrot.lane.b32.xlu0 %v927, 32
    %v930 = vpop.permute.xlu0 %929
    %932 = vst.msk [vmem:[#allocation3 + $0xa] sm:$0x3] %vm301, %v930
    %v933 = vld [vmem:[#allocation2 + $0xc] sm:$0x3]
    %v934 = vpack.c.bf16 %v865, %v865
    %936 = vrot.lane.b32.xlu0 %v934, 32
    %v937 = vpop.permute.xlu0 %936
    %v939 = vsel %vm155, %v937, 0
    %941 = vmatpush.bf16.msra.mxu0 0
    %942 = vmatpush.bf16.msra.mxu0 0
    %943 = vmatpush.bf16.msra.mxu0 0
    %944 = vmatpush.bf16.msra.mxu0 0
    %945 = vmatpush.bf16.msra.mxu0 0
    %946 = vmatpush.bf16.msra.mxu0 0
    %947 = vmatpush.bf16.msra.mxu0 %v152
    %948 = vmatpush.bf16.msra.mxu0 %v151
    %949 = vmatmul.bf16.gmra.mxu0 %v939
    %v950 = vpop.f32.mrf.mxu0
    %v951 = vadd.f32 0.0, %v950
    %v952 = vpop.f32.mrf.mxu0
    %953 = vdwg.mxu0
    %v954 = vadd.f32 %v933, %v951
    %v955 = vxor.u32 %v954, 2147483648
    %v956 = vmul.f32 %v955, 1.442695
    %v957 = vpow.pop %v956
    %v958 = vadd.f32 %v957, 1.0
    %v959 = vrcp.pop %v958
    %v960 = vmul.f32 %v958, %v959
    %v961 = vsub.f32 1.0, %v960
    %v962 = vmul.f32 %v959, %v961
    %v963 = vadd.f32 %v959, %v962
    %vm964 = vweird.f32 %v958
    %vm965 = vweird.f32 %v959
    %vm966 = vmor %vm964, %vm965
    %v967 = vsel %vm966, %v959, %v963
    %v968 = vand.u32 2147483647, %v958
    %vm969 = vcmp.eq.f32.partialorder %v968, 8.507059e+37
    %v970 = vand.u32 %v958, 2147483648
    %v971 = vor.u32 1.1754944e-38, %v970
    %v972 = vsel %vm969, %v971, %v967
    %v973 = vmul.f32 1.0, %v972
    %v974 = vtanh.pop %v954
    %v975 = vmul.f32 %v973, %v859
    %977 = vrot.lane.b32.xlu0 %v974, 64
    %v978 = vpop.permute.xlu0 %977
    %v980 = vmul.f32 %v973, %v978
    %982 = vrot.lane.b32.xlu0 %v980, 32
    %v983 = vpop.permute.xlu0 %982
    %v985 = vadd.f32 %v975, %v983
    %v986 = vtanh.pop %v985
    %988 = vrot.lane.b32.xlu0 %v986, 64
    %v989 = vpop.permute.xlu0 %988
    %v991 = vmul.f32 %v973, %v989
    %993 = vrot.lane.b32.xlu0 %v991, 32
    %v994 = vpop.permute.xlu0 %993
    %996 = vrot.lane.b32.xlu0 %v927, 64
    %v997 = vpop.permute.xlu0 %996
    %v999 = vsel %vm155, %v994, %v997
    %v1000 = vpack.c.bf16 %v999, %v999
    %v1002 = vsel %vm243, %v1000, 0
    %1004 = vmatpush.bf16.msra.mxu0 0
    %1005 = vmatpush.bf16.msra.mxu0 0
    %1006 = vmatpush.bf16.msra.mxu0 0
    %1007 = vmatpush.bf16.msra.mxu0 0
    %1008 = vmatpush.bf16.msra.mxu0 %v238
    %1009 = vmatpush.bf16.msra.mxu0 %v237
    %1010 = vmatpush.bf16.msra.mxu0 %v236
    %1011 = vmatpush.bf16.msra.mxu0 %v235
    %1012 = vmatmul.bf16.gmra.mxu0 %v1002
    %v1013 = vpop.f32.mrf.mxu0
    %v1014 = vadd.f32 %v217, %v1013
    %v1015 = vpop.f32.mrf.mxu0
    %1016 = vdwg.mxu0
    %v1017 = vxor.u32 %v1014, 2147483648
    %v1018 = vmul.f32 %v1017, 1.442695
    %v1019 = vpow.pop %v1018
    %v1020 = vadd.f32 %v1019, 1.0
    %v1021 = vrcp.pop %v1020
    %v1022 = vmul.f32 %v1020, %v1021
    %v1023 = vsub.f32 1.0, %v1022
    %v1024 = vmul.f32 %v1021, %v1023
    %v1025 = vadd.f32 %v1021, %v1024
    %vm1026 = vweird.f32 %v1020
    %vm1027 = vweird.f32 %v1021
    %vm1028 = vmor %vm1026, %vm1027
    %v1029 = vsel %vm1028, %v1021, %v1025
    %v1030 = vand.u32 2147483647, %v1020
    %vm1031 = vcmp.eq.f32.partialorder %v1030, 8.507059e+37
    %v1032 = vand.u32 %v1020, 2147483648
    %v1033 = vor.u32 1.1754944e-38, %v1032
    %v1034 = vsel %vm1031, %v1033, %v1029
    %v1035 = vmul.f32 1.0, %v1034
    %v1036 = vtanh.pop %v1014
    %v1037 = vmul.f32 %v1035, %v921
    %1039 = vrot.lane.b32.xlu0 %v1036, 64
    %v1040 = vpop.permute.xlu0 %1039
    %v1042 = vmul.f32 %v1035, %v1040
    %1044 = vrot.lane.b32.xlu0 %v1042, 32
    %v1045 = vpop.permute.xlu0 %1044
    %v1047 = vadd.f32 %v1037, %v1045
    %v1048 = vtanh.pop %v1047
    %1050 = vrot.lane.b32.xlu0 %v1048, 64
    %v1051 = vpop.permute.xlu0 %1050
    %v1053 = vmul.f32 %v1035, %v1051
    %1055 = vrot.lane.b32.xlu0 %v1053, 32
    %v1056 = vpop.permute.xlu0 %1055
    %1058 = vst.msk [vmem:[#allocation3 + $0xc] sm:$0x3] %vm301, %v1056
    %v1059 = vld [vmem:[#allocation2 + $0xe] sm:$0x3]
    %v1060 = vpack.c.bf16 %v991, %v991
    %1062 = vrot.lane.b32.xlu0 %v1060, 32
    %v1063 = vpop.permute.xlu0 %1062
    %v1065 = vsel %vm155, %v1063, 0
    %1067 = vmatpush.bf16.msra.mxu0 0
    %1068 = vmatpush.bf16.msra.mxu0 0
    %1069 = vmatpush.bf16.msra.mxu0 0
    %1070 = vmatpush.bf16.msra.mxu0 0
    %1071 = vmatpush.bf16.msra.mxu0 0
    %1072 = vmatpush.bf16.msra.mxu0 0
    %1073 = vmatpush.bf16.msra.mxu0 %v152
    %1074 = vmatpush.bf16.msra.mxu0 %v151
    %1075 = vmatmul.bf16.gmra.mxu0 %v1065
    %v1076 = vpop.f32.mrf.mxu0
    %v1077 = vadd.f32 0.0, %v1076
    %v1078 = vpop.f32.mrf.mxu0
    %1079 = vdwg.mxu0
    %v1080 = vadd.f32 %v1059, %v1077
    %v1081 = vxor.u32 %v1080, 2147483648
    %v1082 = vmul.f32 %v1081, 1.442695
    %v1083 = vpow.pop %v1082
    %v1084 = vadd.f32 %v1083, 1.0
    %v1085 = vrcp.pop %v1084
    %v1086 = vmul.f32 %v1084, %v1085
    %v1087 = vsub.f32 1.0, %v1086
    %v1088 = vmul.f32 %v1085, %v1087
    %v1089 = vadd.f32 %v1085, %v1088
    %vm1090 = vweird.f32 %v1084
    %vm1091 = vweird.f32 %v1085
    %vm1092 = vmor %vm1090, %vm1091
    %v1093 = vsel %vm1092, %v1085, %v1089
    %v1094 = vand.u32 2147483647, %v1084
    %vm1095 = vcmp.eq.f32.partialorder %v1094, 8.507059e+37
    %v1096 = vand.u32 %v1084, 2147483648
    %v1097 = vor.u32 1.1754944e-38, %v1096
    %v1098 = vsel %vm1095, %v1097, %v1093
    %v1099 = vmul.f32 1.0, %v1098
    %v1100 = vtanh.pop %v1080
    %v1101 = vmul.f32 %v1099, %v985
    %1103 = vrot.lane.b32.xlu0 %v1100, 64
    %v1104 = vpop.permute.xlu0 %1103
    %v1106 = vmul.f32 %v1099, %v1104
    %1108 = vrot.lane.b32.xlu0 %v1106, 32
    %v1109 = vpop.permute.xlu0 %1108
    %v1111 = vadd.f32 %v1101, %v1109
    %v1112 = vtanh.pop %v1111
    %1114 = vrot.lane.b32.xlu0 %v1112, 64
    %v1115 = vpop.permute.xlu0 %1114
    %v1117 = vmul.f32 %v1099, %v1115
    %1119 = vrot.lane.b32.xlu0 %v1117, 32
    %v1120 = vpop.permute.xlu0 %1119
    %1122 = vrot.lane.b32.xlu0 %v1053, 64
    %v1123 = vpop.permute.xlu0 %1122
    %v1125 = vsel %vm155, %v1120, %v1123
    %v1126 = vpack.c.bf16 %v1125, %v1125
    %v1128 = vsel %vm243, %v1126, 0
    %1130 = vmatpush.bf16.msra.mxu0 0
    %1131 = vmatpush.bf16.msra.mxu0 0
    %1132 = vmatpush.bf16.msra.mxu0 0
    %1133 = vmatpush.bf16.msra.mxu0 0
    %1134 = vmatpush.bf16.msra.mxu0 %v238
    %1135 = vmatpush.bf16.msra.mxu0 %v237
    %1136 = vmatpush.bf16.msra.mxu0 %v236
    %1137 = vmatpush.bf16.msra.mxu0 %v235
    %1138 = vmatmul.bf16.gmra.mxu0 %v1128
    %v1139 = vpop.f32.mrf.mxu0
    %v1140 = vadd.f32 %v217, %v1139
    %v1141 = vpop.f32.mrf.mxu0
    %1142 = vdwg.mxu0
    %v1143 = vxor.u32 %v1140, 2147483648
    %v1144 = vmul.f32 %v1143, 1.442695
    %v1145 = vpow.pop %v1144
    %v1146 = vadd.f32 %v1145, 1.0
    %v1147 = vrcp.pop %v1146
    %v1148 = vmul.f32 %v1146, %v1147
    %v1149 = vsub.f32 1.0, %v1148
    %v1150 = vmul.f32 %v1147, %v1149
    %v1151 = vadd.f32 %v1147, %v1150
    %vm1152 = vweird.f32 %v1146
    %vm1153 = vweird.f32 %v1147
    %vm1154 = vmor %vm1152, %vm1153
    %v1155 = vsel %vm1154, %v1147, %v1151
    %v1156 = vand.u32 2147483647, %v1146
    %vm1157 = vcmp.eq.f32.partialorder %v1156, 8.507059e+37
    %v1158 = vand.u32 %v1146, 2147483648
    %v1159 = vor.u32 1.1754944e-38, %v1158
    %v1160 = vsel %vm1157, %v1159, %v1155
    %v1161 = vmul.f32 1.0, %v1160
    %v1162 = vtanh.pop %v1140
    %v1163 = vmul.f32 %v1161, %v1047
    %1165 = vrot.lane.b32.xlu0 %v1162, 64
    %v1166 = vpop.permute.xlu0 %1165
    %v1168 = vmul.f32 %v1161, %v1166
    %1170 = vrot.lane.b32.xlu0 %v1168, 32
    %v1171 = vpop.permute.xlu0 %1170
    %v1173 = vadd.f32 %v1163, %v1171
    %v1174 = vtanh.pop %v1173
    %1176 = vrot.lane.b32.xlu0 %v1174, 64
    %v1177 = vpop.permute.xlu0 %1176
    %v1179 = vmul.f32 %v1161, %v1177
    %1181 = vrot.lane.b32.xlu0 %v1179, 32
    %v1182 = vpop.permute.xlu0 %1181
    %1184 = vst.msk [vmem:[#allocation3 + $0xe] sm:$0x3] %vm301, %v1182
    %v1185 = vld [vmem:[#allocation3] sm:$0xff]
    %v1186 = vld [vmem:[#allocation3 + $0x8] sm:$0xff]
    %v1187 = vpack.c.bf16 %v1186, %v1185
    %v1188 = vld [vmem:[#allocation9] sm:$0xf]
    %v1189 = vld [vmem:[#allocation9 + $0x4] sm:$0xf]
    %v1190 = vld [vmem:[#allocation9 + $0x8] sm:$0xf]
    %v1191 = vld [vmem:[#allocation9 + $0xc] sm:$0xf]
    %v1192 = vld [vmem:[%s7] sm:$0x1]
    %v1194 = vperm.slane %v1192, 0
    %v1200 = vunpack.c.l.b16 %v1188
    %v1201 = vunpack.c.l.b16 %v1189
    %v1202 = vunpack.c.l.b16 %v1190
    %v1203 = vunpack.c.l.b16 %v1191
    %v1204 = vpack.c.b16 %v1201, %v1200
    %v1205 = vpack.c.b16 %v1203, %v1202
    %v1209 = vsel %vm155, %v1187, 0
    %1211 = vmatpush.bf16.msra.mxu0 0
    %1212 = vmatpush.bf16.msra.mxu0 0
    %1213 = vmatpush.bf16.msra.mxu0 0
    %1214 = vmatpush.bf16.msra.mxu0 0
    %1215 = vmatpush.bf16.msra.mxu0 0
    %1216 = vmatpush.bf16.msra.mxu0 0
    %1217 = vmatpush.bf16.msra.mxu0 %v1205
    %1218 = vmatpush.bf16.msra.mxu0 %v1204
    %1219 = vmatmul.bf16.gmra.mxu0 %v1209
    %v1220 = vpop.f32.mrf.mxu0
    %v1221 = vadd.f32 %v1194, %v1220
    %v1222 = vpop.f32.mrf.mxu0
    %v1223 = vadd.f32 %v1194, %v1222
    %1224 = vdwg.mxu0
    %v1225 = vtanh.pop %v1221
    %v1226 = vtanh.pop %v1223
    %v1227 = vld [vmem:[%s8] sm:$0xff]
    %v1228 = vld [vmem:[%s8 + $0x8] sm:$0xff]
    %v1229 = vld [vmem:[%s8 + $0x10] sm:$0xff]
    %v1230 = vld [vmem:[%s8 + $0x18] sm:$0xff]
    %v1232 = vsel %vm155, %v1225, 0
    %v1235 = vsel %vm155, %v1226, 0
    %1237 = vmatpush.msra.mxu0 0.0
    %1238 = vmatpush.msra.mxu0 0.0
    %1239 = vmatpush.msra.mxu0 0.0
    %1240 = vmatpush.msra.mxu0 0.0
    %1241 = vmatpush.msra.mxu0 0.0
    %1242 = vmatpush.msra.mxu0 0.0
    %1243 = vmatpush.msra.mxu0 0.0
    %1244 = vmatpush.msra.mxu0 0.0
    %1245 = vmatpush.msra.mxu0 0.0
    %1246 = vmatpush.msra.mxu0 0.0
    %1247 = vmatpush.msra.mxu0 0.0
    %1248 = vmatpush.msra.mxu0 0.0
    %1249 = vmatpush.msra.mxu0 %v1230
    %1250 = vmatpush.msra.mxu0 %v1229
    %1251 = vmatpush.msra.mxu0 %v1228
    %1252 = vmatpush.msra.mxu0 %v1227
    %1253 = vmatmul.f32.gmra.mxu0 %v1232
    %v1254 = vpop.f32.mrf.mxu0
    %v1255 = vadd.f32 0.0, %v1254
    %1256 = vmatmul.f32.gmra.mxu0 %v1235
    %v1257 = vpop.f32.mrf.mxu0
    %v1258 = vadd.f32 0.0, %v1257
    %1259 = vdwg.mxu0
    %vm1260 = vcmask 7168
    %v1261 = vsel %vm1260, %v1255, -inf
    %v1262 = vsel %vm1260, %v1258, -inf
    %v1263 = vmax.f32 %v1261, %v1262
    %v1264 = vrot.slane %v1263, 4
    %v1265 = vmax.f32 %v1263, %v1264
    %v1266 = vrot.slane %v1265, 2
    %v1267 = vmax.f32 %v1265, %v1266
    %v1268 = vrot.slane %v1267, 1
    %v1269 = vmax.f32 %v1267, %v1268
    %v1270 = vsub.f32 %v1255, %v1269
    %v1271 = vsub.f32 %v1258, %v1269
    %v1272 = vmul.f32 %v1270, 1.442695
    %v1273 = vpow.pop %v1272
    %v1274 = vmul.f32 %v1271, 1.442695
    %v1275 = vpow.pop %v1274
    %v1276 = vld [vmem:[%s11] sm:$0x3]
    %1278 = vset.pattern.permute.xlu0 0
    %1279 = vperm.xlu0 %1278, %v1273
    %v1280 = vpop.permute.xlu0 %1279
    %1283 = vset.pattern.permute.xlu0 0
    %1284 = vperm.xlu0 %1283, %v1275
    %v1285 = vpop.permute.xlu0 %1284
    %v1287 = vmul.f32 %v1280, %v1185
    %v1288 = vmul.f32 %v1285, %v1186
    %v1290 = vsel %vm109, %v1276, 0
    %1292 = vmatpush.msra.mxu0 0.0
    %1293 = vmatpush.msra.mxu0 0.0
    %1294 = vmatpush.msra.mxu0 0.0
    %1295 = vmatpush.msra.mxu0 0.0
    %1296 = vmatpush.msra.mxu0 0.0
    %1297 = vmatpush.msra.mxu0 0.0
    %1298 = vmatpush.msra.mxu0 0.0
    %1299 = vmatpush.msra.mxu0 0.0
    %1300 = vmatpush.msra.mxu0 0.0
    %1301 = vmatpush.msra.mxu0 0.0
    %1302 = vmatpush.msra.mxu0 0.0
    %1303 = vmatpush.msra.mxu0 0.0
    %1304 = vmatpush.msra.mxu0 0.0
    %1305 = vmatpush.msra.mxu0 0.0
    %1306 = vmatpush.msra.mxu0 %v1288
    %1307 = vmatpush.msra.mxu0 %v1287
    %1308 = vmatmul.f32.gmra.mxu0 %v1290
    %v1309 = vpop.f32.mrf.mxu0
    %v1310 = vadd.f32 0.0, %v1309
    %1311 = vdwg.mxu0
    %1312 = vmatpush.msra.mxu0 0.0
    %1313 = vmatpush.msra.mxu0 0.0
    %1314 = vmatpush.msra.mxu0 0.0
    %1315 = vmatpush.msra.mxu0 0.0
    %1316 = vmatpush.msra.mxu0 0.0
    %1317 = vmatpush.msra.mxu0 0.0
    %1318 = vmatpush.msra.mxu0 0.0
    %1319 = vmatpush.msra.mxu0 0.0
    %1320 = vmatpush.msra.mxu0 0.0
    %1321 = vmatpush.msra.mxu0 0.0
    %1322 = vmatpush.msra.mxu0 0.0
    %1323 = vmatpush.msra.mxu0 0.0
    %1324 = vmatpush.msra.mxu0 0.0
    %1325 = vmatpush.msra.mxu0 0.0
    %1326 = vmatpush.msra.mxu0 %v1275
    %1327 = vmatpush.msra.mxu0 %v1273
    %1328 = vmatmul.f32.gmra.mxu0 %v1290
    %v1329 = vpop.f32.mrf.mxu0
    %v1330 = vadd.f32 0.0, %v1329
    %1331 = vdwg.mxu0
    %v1332 = vrcp.pop %v1330
    %1334 = vset.pattern.permute.xlu0 0
    %1335 = vperm.xlu0 %1334, %v1332
    %v1336 = vpop.permute.xlu0 %1335
    %v1338 = vmul.f32 %v1310, %v1336
    %v1339 = vpack.c.bf16 %v1338, %v1338
    %v1340 = vld [vmem:[%s9] sm:$0xf]
    %v1341 = vld [vmem:[%s9 + $0x4] sm:$0xf]
    %v1342 = vld [vmem:[%s9 + $0x8] sm:$0xf]
    %v1343 = vld [vmem:[%s9 + $0xc] sm:$0xf]
    %v1344 = vld [vmem:[%s10] sm:$0x1]
    %v1346 = vperm.slane %v1344, 0
    %v1352 = vunpack.c.l.b16 %v1340
    %v1353 = vunpack.c.l.b16 %v1341
    %v1354 = vunpack.c.l.b16 %v1342
    %v1355 = vunpack.c.l.b16 %v1343
    %v1356 = vpack.c.b16 %v1353, %v1352
    %v1357 = vpack.c.b16 %v1355, %v1354
    %v1361 = vsel %vm155, %v1339, 0
    %1363 = vmatpush.bf16.msra.mxu0 0
    %1364 = vmatpush.bf16.msra.mxu0 0
    %1365 = vmatpush.bf16.msra.mxu0 0
    %1366 = vmatpush.bf16.msra.mxu0 0
    %1367 = vmatpush.bf16.msra.mxu0 0
    %1368 = vmatpush.bf16.msra.mxu0 0
    %1369 = vmatpush.bf16.msra.mxu0 %v1357
    %1370 = vmatpush.bf16.msra.mxu0 %v1356
    %1371 = vmatmul.bf16.gmra.mxu0 %v1361
    %v1372 = vpop.f32.mrf.mxu0
    %v1373 = vadd.f32 %v1346, %v1372
    %v1374 = vpop.f32.mrf.mxu0
    %1375 = vdwg.mxu0
    %vm1376 = vcmask 9216
    %1377 = vst.msk [vmem:[#allocation10] sm:$0x3] %vm1376, %v1373
    // Predicated region
    $region62: #{tpu_custom_call.1} parent=1 // pred_check
      _
    $region63: #{tpu_custom_call.1} parent=1 // pred_check_branch
      %1379 = sbr.rel (0) target = $region65
    $region64: #{tpu_custom_call.1} parent=1 // pred_region
      %1381 = vsyncadd [#allocation6], 0
      %s1383 = sshll.u32 [#allocation10], 4
      %s1384 = int_to_ptr.vmem [resolvable:$true] %s1383
      %s1385 = sshll.u32 %s12, 4
      %s1386 = int_to_ptr.hbm [resolvable:$true] %s1385
      %1388 = dma.vmem_to_hbm [thread:$0]  %s1384, 32, %s1386, [#allocation6]
    $region65: #{tpu_custom_call.1} parent=1 // pred_fallthru
      _
    // Predicated region
    $region66: #{tpu_custom_call.1} parent=1 // pred_check
      _
    $region67: #{tpu_custom_call.1} parent=1 // pred_check_branch
      %1390 = sbr.rel (0) target = $region69
    $region68: #{tpu_custom_call.1} parent=1 // pred_region
      %1392 = dma.done [#allocation6], 32
    $region69: #{tpu_custom_call.1} parent=1 // pred_fallthru
      _
    %1393 = vsyncpa [#allocation5], 1
    %1394 = vsyncpa [#allocation8], 1
    %1395 = vsyncpa [#allocation6], 1

</llo_original>
